<compile_context>
chip_gen: v7x
topology: tpu7x:2x2x1
jax: 0.10.0
libtpu: 0.0.40
codegen_flags: <defaults>
</compile_context>

<pallas_src>
import math

import jax
import jax.numpy as jnp
from jax.experimental import pallas as pl
from jax.experimental.pallas import tpu as pltpu

N_NODES = 8
N_EDGES = 16
INIT_NODE = 16
HIDDEN_NODE = 32
DROP_P = 0.5
N_GRAPHS = 4            # batch of independent graphs; one grid step each

# ---------------------------------------------------------------------------
# Parameter-slab layout: one [SLAB_ROWS, 64] f32 array. Every matrix/vector is
# row-stacked at an 8-aligned (sublane-aligned) offset with its natural lane
# width (<= 64); unused lanes/rows are zero.
# ---------------------------------------------------------------------------
SLAB_COLS = 2 * HIDDEN_NODE          # 64

WC0_L12W = 0                         # [16, 64]  concat([l1w, l2w], 1)
WC0_M1W = 16                         # [64, 32]
SC0_WL = 80                          # [16, 64]  concat([w, linw], 1)
WC1_L12W = 96                        # [32, 64]
WC1_M1W = 128                        # [64, 32]
SC1_WL = 192                         # [32, 64]
P1W = 224                            # [32, 32]
P2W = 256                            # [32, 32]
# bias / row-vector region: one vector per 8-aligned row
B_WC0_L12B = 288                     # [1, 64]
B_WC0_M1B = 296                      # [1, 32]
B_WC0_M2W = 304                      # [1, 32]
B_WC0_M2B = 312                      # [1, 1]
B_WC1_L12B = 320
B_WC1_M1B = 328
B_WC1_M2W = 336
B_WC1_M2B = 344
B_P1B = 352
B_P2B = 360
SLAB_ROWS = 368


# ---------------------------------------------------------------------------
# Fused Pallas kernel: 2 x (WeightConv mask + SparseConv + ReLU) + post-MLPs.
# One grid step == one graph.
# ---------------------------------------------------------------------------
def smg_stack_kernel(x_ref, a_ref, slab_ref, drop_ref, out_ref):
  x = x_ref[...]                     # [N, INIT_NODE]
  A = a_ref[...]                     # [N, N], A[dst, src] = summed edge weight
  n = x.shape[0]

  def dot(a, b):
    return jnp.dot(a, b, preferred_element_type=jnp.float32)

  def mat(off, rows, cols):          # static sub-block of the param slab
    return slab_ref[off:off + rows, :cols]

  def vec(off, cols):                # single bias / row-vector
    return slab_ref[off:off + 1, :cols]

  # lane-select mask used to rebuild concat([aggr, l2x]) without extra dots
  first_half = (
      jax.lax.broadcasted_iota(jnp.int32, (n, 2 * HIDDEN_NODE), 1) < HIDDEN_NODE
  )

  def weight_conv(xm, w_l12, rows_l12, w_m1, b_l12, b_m1, b_m2w, b_m2b):
    l12w = mat(w_l12, rows_l12, 2 * HIDDEN_NODE)
    l12b = vec(b_l12, 2 * HIDDEN_NODE)
    m1w = mat(w_m1, 2 * HIDDEN_NODE, HIDDEN_NODE)
    m1b = vec(b_m1, HIDDEN_NODE)
    m2w = vec(b_m2w, HIDDEN_NODE)
    m2b = vec(b_m2b, 1)

    hl2 = dot(xm, l12w) + l12b                 # [N, 2H] = [l1(xm) | l2(xm)]
    agg = dot(A, hl2)                          # first half = propagate(l1(xm))
    cat = jnp.where(first_half, agg, hl2)      # == concat([aggr, l2x], -1)
    w = jnp.maximum(dot(jnp.maximum(cat, 0.0), m1w) + m1b, 0.0)
    # mlp2 (hid -> 1): VPU mul + XLU lane reduce; sigmoid on the EUP.
    w = jnp.sum(w * m2w, axis=-1, keepdims=True) + m2b
    return jax.nn.sigmoid(w)                   # [N, 1]

  def sparse_conv(x_in, mask, w_off, rows_w):
    wl = mat(w_off, rows_w, 2 * HIDDEN_NODE)   # [C_in, 2H] = [w | linw]
    hl = dot(x_in, wl)                         # [N, 2H] = [x@w | x@linw]
    h = mask * hl[:, :HIDDEN_NODE]             # (x*mask)@w == mask*(x@w)
    lin = hl[:, HIDDEN_NODE:]
    return (dot(A, h) + lin) * mask            # single accumulate expression

  # ---- layer 0 ----
  mask0 = weight_conv(x, WC0_L12W, INIT_NODE, WC0_M1W,
                      B_WC0_L12B, B_WC0_M1B, B_WC0_M2W, B_WC0_M2B)
  x1 = jnp.maximum(sparse_conv(x, mask0, SC0_WL, INIT_NODE), 0.0)

  # ---- layer 1 (WeightConv sees previous mask) ----
  mask1 = weight_conv(x1 * mask0, WC1_L12W, HIDDEN_NODE, WC1_M1W,
                      B_WC1_L12B, B_WC1_M1B, B_WC1_M2W, B_WC1_M2B)
  x2 = jnp.maximum(sparse_conv(x1, mask1, SC1_WL, HIDDEN_NODE), 0.0)

  # ---- post MLPs + dropout (train mode, p=0.5) ----
  y = jnp.maximum(dot(x2, mat(P1W, HIDDEN_NODE, HIDDEN_NODE))
                  + vec(B_P1B, HIDDEN_NODE), 0.0)
  y = y * drop_ref[...]
  out_ref[...] = (dot(y, mat(P2W, HIDDEN_NODE, HIDDEN_NODE))
                  + vec(B_P2B, HIDDEN_NODE))


def smg_stack_forward(x, adj, slab, drop_scale):
  b, n, _ = x.shape
  return pl.pallas_call(
      smg_stack_kernel,
      out_shape=jax.ShapeDtypeStruct((b, n, HIDDEN_NODE), jnp.float32),
      grid=(b,),
      in_specs=[
          pl.BlockSpec((None, n, INIT_NODE), lambda g: (g, 0, 0)),
          pl.BlockSpec((None, n, n), lambda g: (g, 0, 0)),
          pl.BlockSpec((SLAB_ROWS, SLAB_COLS), lambda g: (0, 0)),  # resident
          pl.BlockSpec((None, n, HIDDEN_NODE), lambda g: (g, 0, 0)),
      ],
      out_specs=pl.BlockSpec((None, n, HIDDEN_NODE), lambda g: (g, 0, 0)),
      compiler_params=pltpu.CompilerParams(
          dimension_semantics=("parallel",)),
  )(x, adj, slab, drop_scale)


# ---------------------------------------------------------------------------
# Glue: deterministic parameter init, slab packing, dense adjacency, reference.
# ---------------------------------------------------------------------------
def _uniform(key, shape, bound):
  return jax.random.uniform(key, shape, jnp.float32, minval=-bound, maxval=bound)


def init_linear(key, fan_in, fan_out, bias=True):
  k1, k2 = jax.random.split(key)
  b = 1.0 / math.sqrt(fan_in)
  w = _uniform(k1, (fan_in, fan_out), b)            # stored as [in, out] (x @ w)
  bb = _uniform(k2, (1, fan_out), b) if bias else None
  return w, bb


def init_params(key):
  keys = jax.random.split(key, 32)
  ki = iter(keys)

  def weight_conv_params(in_c, hid_c):
    l1w, l1b = init_linear(next(ki), in_c, hid_c)
    l2w, l2b = init_linear(next(ki), in_c, hid_c)
    m1w, m1b = init_linear(next(ki), 2 * hid_c, hid_c)
    b = 1.0 / math.sqrt(hid_c)
    m2w = _uniform(next(ki), (1, hid_c), b)          # Linear(hid,1), torch layout
    m2b = _uniform(next(ki), (1, 1), b)
    return dict(l1w=l1w, l1b=l1b, l2w=l2w, l2b=l2b,
                m1w=m1w, m1b=m1b, m2w=m2w, m2b=m2b)

  def sparse_conv_params(in_c, out_c):
    b = 1.0 / math.sqrt(in_c)
    w = _uniform(next(ki), (in_c, out_c), b)                  # pyg uniform init
    linw, _ = init_linear(next(ki), in_c, out_c, bias=False)  # lin (no bias)
    return dict(w=w, linw=linw)

  params = {
      "wc0": weight_conv_params(INIT_NODE, HIDDEN_NODE),
      "sc0": sparse_conv_params(INIT_NODE, HIDDEN_NODE),
      "wc1": weight_conv_params(HIDDEN_NODE, HIDDEN_NODE),
      "sc1": sparse_conv_params(HIDDEN_NODE, HIDDEN_NODE),
  }
  params["p1w"], params["p1b"] = init_linear(next(ki), HIDDEN_NODE, HIDDEN_NODE)
  params["p2w"], params["p2b"] = init_linear(next(ki), HIDDEN_NODE, HIDDEN_NODE)
  return params


def pack_param_slab(params):
  """Pack all layer parameters into one [SLAB_ROWS, 64] f32 VMEM slab."""
  slab = jnp.zeros((SLAB_ROWS, SLAB_COLS), jnp.float32)

  def put(s, off, arr):
    r, c = arr.shape
    return s.at[off:off + r, :c].set(arr)

  wc0, wc1 = params["wc0"], params["wc1"]
  sc0, sc1 = params["sc0"], params["sc1"]
  slab = put(slab, WC0_L12W, jnp.concatenate([wc0["l1w"], wc0["l2w"]], axis=1))
  slab = put(slab, WC0_M1W, wc0["m1w"])
  slab = put(slab, SC0_WL, jnp.concatenate([sc0["w"], sc0["linw"]], axis=1))
  slab = put(slab, WC1_L12W, jnp.concatenate([wc1["l1w"], wc1["l2w"]], axis=1))
  slab = put(slab, WC1_M1W, wc1["m1w"])
  slab = put(slab, SC1_WL, jnp.concatenate([sc1["w"], sc1["linw"]], axis=1))
  slab = put(slab, P1W, params["p1w"])
  slab = put(slab, P2W, params["p2w"])
  slab = put(slab, B_WC0_L12B, jnp.concatenate([wc0["l1b"], wc0["l2b"]], axis=1))
  slab = put(slab, B_WC0_M1B, wc0["m1b"])
  slab = put(slab, B_WC0_M2W, wc0["m2w"])
  slab = put(slab, B_WC0_M2B, wc0["m2b"])
  slab = put(slab, B_WC1_L12B, jnp.concatenate([wc1["l1b"], wc1["l2b"]], axis=1))
  slab = put(slab, B_WC1_M1B, wc1["m1b"])
  slab = put(slab, B_WC1_M2W, wc1["m2w"])
  slab = put(slab, B_WC1_M2B, wc1["m2b"])
  slab = put(slab, B_P1B, params["p1b"])
  slab = put(slab, B_P2B, params["p2b"])
  return slab


def build_dense_adjacency(edge_index, edge_attr, n_nodes):
  src, dst = edge_index[0], edge_index[1]
  adj = jnp.zeros((n_nodes, n_nodes), jnp.float32)
  # scatter-add of edge weights: aggr_out[dst] += w * h[src]  ==  (A @ h)[dst]
  return adj.at[dst, src].add(edge_attr)


def reference_forward(x, adj, params, drop_scale):
  """Pure-JAX reference of the (unfused) forward, single graph."""
  def wc(xm, p):
    h = xm @ p["l1w"] + p["l1b"]
    aggr = adj @ h
    l2x = xm @ p["l2w"] + p["l2b"]
    w = jax.nn.relu(jnp.concatenate([aggr, l2x], axis=-1))
    w = jax.nn.relu(w @ p["m1w"] + p["m1b"])
    w = jnp.sum(w * p["m2w"], axis=-1, keepdims=True) + p["m2b"]
    return jax.nn.sigmoid(w)

  def sc(x_in, mask, p):
    h = (x_in * mask) @ p["w"]
    return (adj @ h + x_in @ p["linw"]) * mask

  mask0 = wc(x, params["wc0"])
  x1 = jax.nn.relu(sc(x, mask0, params["sc0"]))
  mask1 = wc(x1 * mask0, params["wc1"])
  x2 = jax.nn.relu(sc(x1, mask1, params["sc1"]))
  y = jax.nn.relu(x2 @ params["p1w"] + params["p1b"])
  y = y * drop_scale
  return y @ params["p2w"] + params["p2b"]


if __name__ == "__main__":
  root = jax.random.PRNGKey(0)
  k_x, k_ei, k_ea, k_drop, k_params = jax.random.split(root, 5)

  # inputs: batch of graphs — node features, edge_index [2, E], edge_attr [E]
  x = jax.random.normal(k_x, (N_GRAPHS, N_NODES, INIT_NODE), jnp.float32)
  edge_index = jax.random.randint(k_ei, (N_GRAPHS, 2, N_EDGES), 0, N_NODES,
                                  jnp.int32)
  edge_attr = jax.random.uniform(k_ea, (N_GRAPHS, N_EDGES), jnp.float32)

  params = init_params(k_params)
  slab = pack_param_slab(params)
  adj = jax.vmap(build_dense_adjacency, in_axes=(0, 0, None))(
      edge_index, edge_attr, N_NODES)

  # dropout (p=0.5, training=True in the torch forward): deterministic JAX mask.
  keep = jax.random.bernoulli(k_drop, 1.0 - DROP_P,
                              (N_GRAPHS, N_NODES, HIDDEN_NODE))
  drop_scale = keep.astype(jnp.float32) / (1.0 - DROP_P)

  out = smg_stack_forward(x, adj, slab, drop_scale)
  out = jax.block_until_ready(out)

  ref = jax.vmap(
      lambda xb, ab, db: reference_forward(xb, ab, params, db))(x, adj,
                                                                drop_scale)
  assert out.shape == (N_GRAPHS, N_NODES, HIDDEN_NODE)
  assert jnp.allclose(out, ref, atol=1e-4, rtol=1e-4), "mismatch vs JAX reference"

  print("KERNEL_OK")
</pallas_src>

<mosaic_0001>
module attributes {stable_mosaic.version = 11 : i64} {
  func.func @smg_stack_kernel(%arg0: i32, %arg1: memref<1x8x16xf32, #tpu.memory_space<vmem>>, %arg2: memref<1x8x8xf32, #tpu.memory_space<vmem>>, %arg3: memref<368x64xf32, #tpu.memory_space<vmem>>, %arg4: memref<1x8x32xf32, #tpu.memory_space<vmem>>, %arg5: memref<1x8x32xf32, #tpu.memory_space<vmem>>) attributes {dimension_semantics = [#tpu.dimension_semantics<parallel>], iteration_bounds = array<i64: 4>, scalar_prefetch = 0 : i64, scratch_operands = 0 : i64, tpu.core_type = #tpu.core_type<tc>, window_params = [{transform_indices = @transform_0, window_bounds = array<i64: 1, 8, 16>}, {transform_indices = @transform_1, window_bounds = array<i64: 1, 8, 8>}, {pipeline_mode = #tpu.pipeline_mode<synchronous>, transform_indices = @transform_2, window_bounds = array<i64: 368, 64>}, {transform_indices = @transform_3, window_bounds = array<i64: 1, 8, 32>}, {transform_indices = @transform_4, window_bounds = array<i64: 1, 8, 32>}]} {
    %c0 = arith.constant 0 : index
    %c0_0 = arith.constant 0 : index
    %c0_1 = arith.constant 0 : index
    %0 = vector.load %arg1[%c0, %c0_0, %c0_1] : memref<1x8x16xf32, #tpu.memory_space<vmem>>, vector<1x8x16xf32>
    %1 = vector.shape_cast %0 : vector<1x8x16xf32> to vector<8x16xf32>
    %c0_2 = arith.constant 0 : index
    %c0_3 = arith.constant 0 : index
    %c0_4 = arith.constant 0 : index
    %2 = vector.load %arg2[%c0_2, %c0_3, %c0_4] : memref<1x8x8xf32, #tpu.memory_space<vmem>>, vector<1x8x8xf32>
    %3 = vector.shape_cast %2 : vector<1x8x8xf32> to vector<8x8xf32>
    %4 = tpu.iota {dimensions = array<i32: 1>} : vector<8x64xi32>
    %c32_i32 = arith.constant 32 : i32
    %5 = vector.broadcast %c32_i32 : i32 to vector<8x64xi32>
    %6 = arith.cmpi slt, %4, %5 : vector<8x64xi32>
    %c0_5 = arith.constant 0 : index
    %c0_6 = arith.constant 0 : index
    %7 = vector.load %arg3[%c0_5, %c0_6] : memref<368x64xf32, #tpu.memory_space<vmem>>, vector<16x64xf32>
    %c288 = arith.constant 288 : index
    %c0_7 = arith.constant 0 : index
    %8 = vector.load %arg3[%c288, %c0_7] : memref<368x64xf32, #tpu.memory_space<vmem>>, vector<1x64xf32>
    %c16 = arith.constant 16 : index
    %c0_8 = arith.constant 0 : index
    %9 = vector.load %arg3[%c16, %c0_8] : memref<368x64xf32, #tpu.memory_space<vmem>>, vector<64x32xf32>
    %c296 = arith.constant 296 : index
    %c0_9 = arith.constant 0 : index
    %10 = vector.load %arg3[%c296, %c0_9] : memref<368x64xf32, #tpu.memory_space<vmem>>, vector<1x32xf32>
    %c304 = arith.constant 304 : index
    %c0_10 = arith.constant 0 : index
    %11 = vector.load %arg3[%c304, %c0_10] : memref<368x64xf32, #tpu.memory_space<vmem>>, vector<1x32xf32>
    %c312 = arith.constant 312 : index
    %c0_11 = arith.constant 0 : index
    %12 = vector.load %arg3[%c312, %c0_11] : memref<368x64xf32, #tpu.memory_space<vmem>>, vector<1x1xf32>
    %cst = arith.constant dense<0.000000e+00> : vector<8x64xf32>
    %13 = tpu.matmul %1, %7, %cst {dimension_numbers = #tpu.dot_dimension_numbers<[1], [0], [0], [1], [0, 0, 1, 1], [], []>} : vector<8x16xf32>, vector<16x64xf32>, vector<8x64xf32> -> vector<8x64xf32>
    %14 = vector.broadcast %8 : vector<1x64xf32> to vector<8x64xf32>
    %15 = arith.addf %13, %14 : vector<8x64xf32>
    %cst_12 = arith.constant dense<0.000000e+00> : vector<8x64xf32>
    %16 = tpu.matmul %3, %15, %cst_12 {dimension_numbers = #tpu.dot_dimension_numbers<[1], [0], [0], [1], [0, 0, 1, 1], [], []>} : vector<8x8xf32>, vector<8x64xf32>, vector<8x64xf32> -> vector<8x64xf32>
    %17 = arith.select %6, %16, %15 : vector<8x64xi1>, vector<8x64xf32>
    %cst_13 = arith.constant 0.000000e+00 : f32
    %18 = vector.broadcast %cst_13 : f32 to vector<8x64xf32>
    %19 = arith.maximumf %17, %18 : vector<8x64xf32>
    %cst_14 = arith.constant dense<0.000000e+00> : vector<8x32xf32>
    %20 = tpu.matmul %19, %9, %cst_14 {dimension_numbers = #tpu.dot_dimension_numbers<[1], [0], [0], [1], [0, 0, 1, 1], [], []>} : vector<8x64xf32>, vector<64x32xf32>, vector<8x32xf32> -> vector<8x32xf32>
    %21 = vector.broadcast %10 : vector<1x32xf32> to vector<8x32xf32>
    %22 = arith.addf %20, %21 : vector<8x32xf32>
    %cst_15 = arith.constant 0.000000e+00 : f32
    %23 = vector.broadcast %cst_15 : f32 to vector<8x32xf32>
    %24 = arith.maximumf %22, %23 : vector<8x32xf32>
    %25 = vector.broadcast %11 : vector<1x32xf32> to vector<8x32xf32>
    %26 = arith.mulf %24, %25 : vector<8x32xf32>
    %cst_16 = arith.constant dense<0.000000e+00> : vector<8xf32>
    %27 = vector.multi_reduction <add>, %26, %cst_16 [1] : vector<8x32xf32> to vector<8xf32>
    %28 = vector.shape_cast %27 : vector<8xf32> to vector<8x1xf32>
    %29 = vector.broadcast %12 : vector<1x1xf32> to vector<8x1xf32>
    %30 = arith.addf %28, %29 : vector<8x1xf32>
    %31 = arith.negf %30 : vector<8x1xf32>
    %32 = math.exp %31 : vector<8x1xf32>
    %cst_17 = arith.constant 1.000000e+00 : f32
    %33 = vector.broadcast %cst_17 : f32 to vector<8x1xf32>
    %34 = arith.addf %33, %32 : vector<8x1xf32>
    %35 = arith.divf %33, %34 : vector<8x1xf32>
    %c80 = arith.constant 80 : index
    %c0_18 = arith.constant 0 : index
    %36 = vector.load %arg3[%c80, %c0_18] : memref<368x64xf32, #tpu.memory_space<vmem>>, vector<16x64xf32>
    %cst_19 = arith.constant dense<0.000000e+00> : vector<8x64xf32>
    %37 = tpu.matmul %1, %36, %cst_19 {dimension_numbers = #tpu.dot_dimension_numbers<[1], [0], [0], [1], [0, 0, 1, 1], [], []>} : vector<8x16xf32>, vector<16x64xf32>, vector<8x64xf32> -> vector<8x64xf32>
    %38 = vector.extract_strided_slice %37 {offsets = [0, 0], sizes = [8, 32], strides = [1, 1]} : vector<8x64xf32> to vector<8x32xf32>
    %39 = vector.broadcast %35 : vector<8x1xf32> to vector<8x32xf32>
    %40 = arith.mulf %39, %38 : vector<8x32xf32>
    %41 = vector.extract_strided_slice %37 {offsets = [0, 32], sizes = [8, 32], strides = [1, 1]} : vector<8x64xf32> to vector<8x32xf32>
    %cst_20 = arith.constant dense<0.000000e+00> : vector<8x32xf32>
    %42 = tpu.matmul %3, %40, %cst_20 {dimension_numbers = #tpu.dot_dimension_numbers<[1], [0], [0], [1], [0, 0, 1, 1], [], []>} : vector<8x8xf32>, vector<8x32xf32>, vector<8x32xf32> -> vector<8x32xf32>
    %43 = arith.addf %42, %41 : vector<8x32xf32>
    %44 = vector.broadcast %35 : vector<8x1xf32> to vector<8x32xf32>
    %45 = arith.mulf %43, %44 : vector<8x32xf32>
    %cst_21 = arith.constant 0.000000e+00 : f32
    %46 = vector.broadcast %cst_21 : f32 to vector<8x32xf32>
    %47 = arith.maximumf %45, %46 : vector<8x32xf32>
    %48 = vector.broadcast %35 : vector<8x1xf32> to vector<8x32xf32>
    %49 = arith.mulf %47, %48 : vector<8x32xf32>
    %c96 = arith.constant 96 : index
    %c0_22 = arith.constant 0 : index
    %50 = vector.load %arg3[%c96, %c0_22] : memref<368x64xf32, #tpu.memory_space<vmem>>, vector<32x64xf32>
    %c320 = arith.constant 320 : index
    %c0_23 = arith.constant 0 : index
    %51 = vector.load %arg3[%c320, %c0_23] : memref<368x64xf32, #tpu.memory_space<vmem>>, vector<1x64xf32>
    %c128 = arith.constant 128 : index
    %c0_24 = arith.constant 0 : index
    %52 = vector.load %arg3[%c128, %c0_24] : memref<368x64xf32, #tpu.memory_space<vmem>>, vector<64x32xf32>
    %c328 = arith.constant 328 : index
    %c0_25 = arith.constant 0 : index
    %53 = vector.load %arg3[%c328, %c0_25] : memref<368x64xf32, #tpu.memory_space<vmem>>, vector<1x32xf32>
    %c336 = arith.constant 336 : index
    %c0_26 = arith.constant 0 : index
    %54 = vector.load %arg3[%c336, %c0_26] : memref<368x64xf32, #tpu.memory_space<vmem>>, vector<1x32xf32>
    %c344 = arith.constant 344 : index
    %c0_27 = arith.constant 0 : index
    %55 = vector.load %arg3[%c344, %c0_27] : memref<368x64xf32, #tpu.memory_space<vmem>>, vector<1x1xf32>
    %cst_28 = arith.constant dense<0.000000e+00> : vector<8x64xf32>
    %56 = tpu.matmul %49, %50, %cst_28 {dimension_numbers = #tpu.dot_dimension_numbers<[1], [0], [0], [1], [0, 0, 1, 1], [], []>} : vector<8x32xf32>, vector<32x64xf32>, vector<8x64xf32> -> vector<8x64xf32>
    %57 = vector.broadcast %51 : vector<1x64xf32> to vector<8x64xf32>
    %58 = arith.addf %56, %57 : vector<8x64xf32>
    %cst_29 = arith.constant dense<0.000000e+00> : vector<8x64xf32>
    %59 = tpu.matmul %3, %58, %cst_29 {dimension_numbers = #tpu.dot_dimension_numbers<[1], [0], [0], [1], [0, 0, 1, 1], [], []>} : vector<8x8xf32>, vector<8x64xf32>, vector<8x64xf32> -> vector<8x64xf32>
    %60 = arith.select %6, %59, %58 : vector<8x64xi1>, vector<8x64xf32>
    %cst_30 = arith.constant 0.000000e+00 : f32
    %61 = vector.broadcast %cst_30 : f32 to vector<8x64xf32>
    %62 = arith.maximumf %60, %61 : vector<8x64xf32>
    %cst_31 = arith.constant dense<0.000000e+00> : vector<8x32xf32>
    %63 = tpu.matmul %62, %52, %cst_31 {dimension_numbers = #tpu.dot_dimension_numbers<[1], [0], [0], [1], [0, 0, 1, 1], [], []>} : vector<8x64xf32>, vector<64x32xf32>, vector<8x32xf32> -> vector<8x32xf32>
    %64 = vector.broadcast %53 : vector<1x32xf32> to vector<8x32xf32>
    %65 = arith.addf %63, %64 : vector<8x32xf32>
    %cst_32 = arith.constant 0.000000e+00 : f32
    %66 = vector.broadcast %cst_32 : f32 to vector<8x32xf32>
    %67 = arith.maximumf %65, %66 : vector<8x32xf32>
    %68 = vector.broadcast %54 : vector<1x32xf32> to vector<8x32xf32>
    %69 = arith.mulf %67, %68 : vector<8x32xf32>
    %cst_33 = arith.constant dense<0.000000e+00> : vector<8xf32>
    %70 = vector.multi_reduction <add>, %69, %cst_33 [1] : vector<8x32xf32> to vector<8xf32>
    %71 = vector.shape_cast %70 : vector<8xf32> to vector<8x1xf32>
    %72 = vector.broadcast %55 : vector<1x1xf32> to vector<8x1xf32>
    %73 = arith.addf %71, %72 : vector<8x1xf32>
    %74 = arith.negf %73 : vector<8x1xf32>
    %75 = math.exp %74 : vector<8x1xf32>
    %cst_34 = arith.constant 1.000000e+00 : f32
    %76 = vector.broadcast %cst_34 : f32 to vector<8x1xf32>
    %77 = arith.addf %76, %75 : vector<8x1xf32>
    %78 = arith.divf %76, %77 : vector<8x1xf32>
    %c192 = arith.constant 192 : index
    %c0_35 = arith.constant 0 : index
    %79 = vector.load %arg3[%c192, %c0_35] : memref<368x64xf32, #tpu.memory_space<vmem>>, vector<32x64xf32>
    %cst_36 = arith.constant dense<0.000000e+00> : vector<8x64xf32>
    %80 = tpu.matmul %47, %79, %cst_36 {dimension_numbers = #tpu.dot_dimension_numbers<[1], [0], [0], [1], [0, 0, 1, 1], [], []>} : vector<8x32xf32>, vector<32x64xf32>, vector<8x64xf32> -> vector<8x64xf32>
    %81 = vector.extract_strided_slice %80 {offsets = [0, 0], sizes = [8, 32], strides = [1, 1]} : vector<8x64xf32> to vector<8x32xf32>
    %82 = vector.broadcast %78 : vector<8x1xf32> to vector<8x32xf32>
    %83 = arith.mulf %82, %81 : vector<8x32xf32>
    %84 = vector.extract_strided_slice %80 {offsets = [0, 32], sizes = [8, 32], strides = [1, 1]} : vector<8x64xf32> to vector<8x32xf32>
    %cst_37 = arith.constant dense<0.000000e+00> : vector<8x32xf32>
    %85 = tpu.matmul %3, %83, %cst_37 {dimension_numbers = #tpu.dot_dimension_numbers<[1], [0], [0], [1], [0, 0, 1, 1], [], []>} : vector<8x8xf32>, vector<8x32xf32>, vector<8x32xf32> -> vector<8x32xf32>
    %86 = arith.addf %85, %84 : vector<8x32xf32>
    %87 = vector.broadcast %78 : vector<8x1xf32> to vector<8x32xf32>
    %88 = arith.mulf %86, %87 : vector<8x32xf32>
    %cst_38 = arith.constant 0.000000e+00 : f32
    %89 = vector.broadcast %cst_38 : f32 to vector<8x32xf32>
    %90 = arith.maximumf %88, %89 : vector<8x32xf32>
    %c224 = arith.constant 224 : index
    %c0_39 = arith.constant 0 : index
    %91 = vector.load %arg3[%c224, %c0_39] : memref<368x64xf32, #tpu.memory_space<vmem>>, vector<32x32xf32>
    %cst_40 = arith.constant dense<0.000000e+00> : vector<8x32xf32>
    %92 = tpu.matmul %90, %91, %cst_40 {dimension_numbers = #tpu.dot_dimension_numbers<[1], [0], [0], [1], [0, 0, 1, 1], [], []>} : vector<8x32xf32>, vector<32x32xf32>, vector<8x32xf32> -> vector<8x32xf32>
    %c352 = arith.constant 352 : index
    %c0_41 = arith.constant 0 : index
    %93 = vector.load %arg3[%c352, %c0_41] : memref<368x64xf32, #tpu.memory_space<vmem>>, vector<1x32xf32>
    %94 = vector.broadcast %93 : vector<1x32xf32> to vector<8x32xf32>
    %95 = arith.addf %92, %94 : vector<8x32xf32>
    %cst_42 = arith.constant 0.000000e+00 : f32
    %96 = vector.broadcast %cst_42 : f32 to vector<8x32xf32>
    %97 = arith.maximumf %95, %96 : vector<8x32xf32>
    %c0_43 = arith.constant 0 : index
    %c0_44 = arith.constant 0 : index
    %c0_45 = arith.constant 0 : index
    %98 = vector.load %arg4[%c0_43, %c0_44, %c0_45] : memref<1x8x32xf32, #tpu.memory_space<vmem>>, vector<1x8x32xf32>
    %99 = vector.shape_cast %98 : vector<1x8x32xf32> to vector<8x32xf32>
    %100 = arith.mulf %97, %99 : vector<8x32xf32>
    %c256 = arith.constant 256 : index
    %c0_46 = arith.constant 0 : index
    %101 = vector.load %arg3[%c256, %c0_46] : memref<368x64xf32, #tpu.memory_space<vmem>>, vector<32x32xf32>
    %cst_47 = arith.constant dense<0.000000e+00> : vector<8x32xf32>
    %102 = tpu.matmul %100, %101, %cst_47 {dimension_numbers = #tpu.dot_dimension_numbers<[1], [0], [0], [1], [0, 0, 1, 1], [], []>} : vector<8x32xf32>, vector<32x32xf32>, vector<8x32xf32> -> vector<8x32xf32>
    %c360 = arith.constant 360 : index
    %c0_48 = arith.constant 0 : index
    %103 = vector.load %arg3[%c360, %c0_48] : memref<368x64xf32, #tpu.memory_space<vmem>>, vector<1x32xf32>
    %104 = vector.broadcast %103 : vector<1x32xf32> to vector<8x32xf32>
    %105 = arith.addf %102, %104 : vector<8x32xf32>
    %c0_49 = arith.constant 0 : index
    %c0_50 = arith.constant 0 : index
    %c0_51 = arith.constant 0 : index
    %106 = vector.load %arg5[%c0_49, %c0_50, %c0_51] : memref<1x8x32xf32, #tpu.memory_space<vmem>>, vector<1x8x32xf32>
    %107 = vector.shape_cast %106 : vector<1x8x32xf32> to vector<8x32xf32>
    %108 = vector.shape_cast %105 : vector<8x32xf32> to vector<1x8x32xf32>
    tpu.vector_store %arg5[%c0_49, %c0_50, %c0_51], %108 {strides = array<i32>} : memref<1x8x32xf32, #tpu.memory_space<vmem>>, vector<1x8x32xf32>,
    return
  }
  func.func @transform_0(%arg0: i32) -> (i32, i32, i32) {
    %c0_i32 = arith.constant 0 : i32
    %c0_i32_0 = arith.constant 0 : i32
    %c0_i32_1 = arith.constant 0 : i32
    return %arg0, %c0_i32, %c0_i32_0 : i32, i32, i32
  }
  func.func @transform_1(%arg0: i32) -> (i32, i32, i32) {
    %c0_i32 = arith.constant 0 : i32
    %c0_i32_0 = arith.constant 0 : i32
    %c0_i32_1 = arith.constant 0 : i32
    return %arg0, %c0_i32, %c0_i32_0 : i32, i32, i32
  }
  func.func @transform_2(%arg0: i32) -> (i32, i32) {
    %c0_i32 = arith.constant 0 : i32
    %c0_i32_0 = arith.constant 0 : i32
    %c0_i32_1 = arith.constant 0 : i32
    return %c0_i32, %c0_i32_0 : i32, i32
  }
  func.func @transform_3(%arg0: i32) -> (i32, i32, i32) {
    %c0_i32 = arith.constant 0 : i32
    %c0_i32_0 = arith.constant 0 : i32
    %c0_i32_1 = arith.constant 0 : i32
    return %arg0, %c0_i32, %c0_i32_0 : i32, i32, i32
  }
  func.func @transform_4(%arg0: i32) -> (i32, i32, i32) {
    %c0_i32 = arith.constant 0 : i32
    %c0_i32_0 = arith.constant 0 : i32
    %c0_i32_1 = arith.constant 0 : i32
    return %arg0, %c0_i32, %c0_i32_0 : i32, i32, i32
  }
}

</mosaic_0001>

<llo_original>
// kernel: tpu_custom_call.1
$region0: #{tpu_custom_call.1}
  #allocation0 [shape = 'u32[]', space=smem, size = 0x4, offset = 0x4, fixed_abs, tag = 'smem constant byte address 0x4 - core index']
  #allocation1 [shape = 'u32[144,128]{1,0:T(1,128)}', space=vmem, size = 0x12000, scoped, tag = 'internal scratch']
  %s0 = inlined_call_operand.vmem [shape: f32[4,8,16], index: 0, kind: input, shape index: {}]
  %s1 = inlined_call_operand.vmem [shape: f32[4,8,8], index: 1, kind: input, shape index: {}]
  %s2 = inlined_call_operand.vmem [shape: f32[368,64], index: 2, kind: input, shape index: {}]
  %s3 = inlined_call_operand.vmem [shape: f32[4,8,32], index: 3, kind: input, shape index: {}]
  %s4 = inlined_call_operand.hbm [shape: f32[4,8,32], index: 4, kind: output, shape index: {}]
  %s5 = sld [smem:[#allocation0]]
  $region49: #{tpu_custom_call.1} parent=0
    _
  %s7 = ssub.s32 1, %s5
  %s8 = scalar_select 0, %s7, %s5
  $region1: #{tpu_custom_call.1} parent=0
    #allocation2 [shape = 'u8[8192]{0}', space=vmem, size = 0x2000, scoped, tag = 'output window, operand 0']
    #allocation3 [shape = 's32[2]{0}', space=sflag, size = 0x8, scoped, tag = 'scoped memory for tpu_custom_call.1']
    %9 = vsyncpa [#allocation3], 0
    %s10 = scalar_lea.sflag [#allocation3], 1
    %11 = vsyncpa %s10, 0
    loop: start=0, step=1, limit=6
    $region2: #{tpu_custom_call.1} parent=1 // loop_pre_header
      _
    $region3: #{tpu_custom_call.1} parent=1 // loop_header
      %s13 = sphi 0, %s17
      %p14 = scmp.ge.s32.totalorder %s13, 6
      %s23 = sphi 0, %s25
      %s26 = sphi 0, %s23
      %s27 = sphi 0, %s26
      %s43 = sphi 0, %s27
      %s49 = sphi 0, %s51
      %s52 = sphi 0, %s49
      %s53 = sphi 0, %s52
      %s69 = sphi 0, %s53
      %s73 = sphi 0, %s73
      %s75 = sphi 0, %s73
      %s76 = sphi 0, %s75
      %s90 = sphi 0, %s76
      %s96 = sphi 0, %s98
      %s99 = sphi 0, %s96
      %s100 = sphi 0, %s99
      %s116 = sphi 0, %s100
      %s122 = sphi 0, %s124
      %s125 = sphi 0, %s122
      %s126 = sphi 0, %s125
      %s142 = sphi 0, %s126
    $region4: #{tpu_custom_call.1} parent=1 // loop_header_branch
      %16 = sbr.rel (%p14) target = $region8
    $region5: #{tpu_custom_call.1} parent=1 // loop_body
      %s18 = ssub.s32 %s13, 1
      %s19 = ssub.s32 %s13, 2
      %s20 = sadd.s32 %s13, 1
      %s21 = ssub.s32 %s13, %s20
      %p22 = scmp.eq.s32.totalorder %s21, 0
      %s24 = sadd.s32 %s23, 1
      %s25 = scalar_select %p22, %s23, %s24
      %p28 = pneg %p22
      %p29 = scmp.eq.s32.totalorder %s13, 3
      %p30 = por %p28, %p29
      %p31 = scmp.ne.s32.totalorder %s23, %s26
      %p32 = scmp.eq.s32.totalorder %s13, 0
      %p33 = por %p31, %p32
      %p34 = scmp.ne.s32.totalorder %s23, %s26
      %p35 = scmp.eq.s32.totalorder %s18, 3
      %p36 = por %p34, %p35
      %p37 = scmp.ne.s32.totalorder %s26, %s27
      %p38 = scmp.eq.s32.totalorder %s18, 0
      %p39 = por %p37, %p38
      %p40 = scmp.ne.s32.totalorder %s26, %s27
      %p41 = scmp.eq.s32.totalorder %s19, 3
      %p42 = por %p40, %p41
      %p44 = scmp.ne.s32.totalorder %s27, %s43
      %p45 = scmp.eq.s32.totalorder %s19, 0
      %p46 = por %p44, %p45
      %s47 = ssub.s32 %s13, %s20
      %p48 = scmp.eq.s32.totalorder %s47, 0
      %s50 = sadd.s32 %s49, 1
      %s51 = scalar_select %p48, %s49, %s50
      %p54 = pneg %p48
      %p55 = scmp.eq.s32.totalorder %s13, 3
      %p56 = por %p54, %p55
      %p57 = scmp.ne.s32.totalorder %s49, %s52
      %p58 = scmp.eq.s32.totalorder %s13, 0
      %p59 = por %p57, %p58
      %p60 = scmp.ne.s32.totalorder %s49, %s52
      %p61 = scmp.eq.s32.totalorder %s18, 3
      %p62 = por %p60, %p61
      %p63 = scmp.ne.s32.totalorder %s52, %s53
      %p64 = scmp.eq.s32.totalorder %s18, 0
      %p65 = por %p63, %p64
      %p66 = scmp.ne.s32.totalorder %s52, %s53
      %p67 = scmp.eq.s32.totalorder %s19, 3
      %p68 = por %p66, %p67
      %p70 = scmp.ne.s32.totalorder %s53, %s69
      %p71 = scmp.eq.s32.totalorder %s19, 0
      %p72 = por %p70, %p71
      %s74 = sadd.s32 %s73, 1
      %p77 = scmp.eq.s32.totalorder %s13, 3
      %p78 = scmp.ne.s32.totalorder %s73, %s75
      %p79 = scmp.eq.s32.totalorder %s13, 0
      %p80 = por %p78, %p79
      %p81 = scmp.ne.s32.totalorder %s73, %s75
      %p82 = scmp.eq.s32.totalorder %s18, 3
      %p83 = por %p81, %p82
      %p84 = scmp.ne.s32.totalorder %s75, %s76
      %p85 = scmp.eq.s32.totalorder %s18, 0
      %p86 = por %p84, %p85
      %p87 = scmp.ne.s32.totalorder %s75, %s76
      %p88 = scmp.eq.s32.totalorder %s19, 3
      %p89 = por %p87, %p88
      %p91 = scmp.ne.s32.totalorder %s76, %s90
      %p92 = scmp.eq.s32.totalorder %s19, 0
      %p93 = por %p91, %p92
      %s94 = ssub.s32 %s13, %s20
      %p95 = scmp.eq.s32.totalorder %s94, 0
      %s97 = sadd.s32 %s96, 1
      %s98 = scalar_select %p95, %s96, %s97
      %p101 = pneg %p95
      %p102 = scmp.eq.s32.totalorder %s13, 3
      %p103 = por %p101, %p102
      %p104 = scmp.ne.s32.totalorder %s96, %s99
      %p105 = scmp.eq.s32.totalorder %s13, 0
      %p106 = por %p104, %p105
      %p107 = scmp.ne.s32.totalorder %s96, %s99
      %p108 = scmp.eq.s32.totalorder %s18, 3
      %p109 = por %p107, %p108
      %p110 = scmp.ne.s32.totalorder %s99, %s100
      %p111 = scmp.eq.s32.totalorder %s18, 0
      %p112 = por %p110, %p111
      %p113 = scmp.ne.s32.totalorder %s99, %s100
      %p114 = scmp.eq.s32.totalorder %s19, 3
      %p115 = por %p113, %p114
      %p117 = scmp.ne.s32.totalorder %s100, %s116
      %p118 = scmp.eq.s32.totalorder %s19, 0
      %p119 = por %p117, %p118
      %s120 = ssub.s32 %s13, %s20
      %p121 = scmp.eq.s32.totalorder %s120, 0
      %s123 = sadd.s32 %s122, 1
      %s124 = scalar_select %p121, %s122, %s123
      %p127 = pneg %p121
      %p128 = scmp.eq.s32.totalorder %s13, 3
      %p129 = por %p127, %p128
      %p130 = scmp.ne.s32.totalorder %s122, %s125
      %p131 = scmp.eq.s32.totalorder %s13, 0
      %p132 = por %p130, %p131
      %p133 = scmp.ne.s32.totalorder %s122, %s125
      %p134 = scmp.eq.s32.totalorder %s18, 3
      %p135 = por %p133, %p134
      %p136 = scmp.ne.s32.totalorder %s125, %s126
      %p137 = scmp.eq.s32.totalorder %s18, 0
      %p138 = por %p136, %p137
      %p139 = scmp.ne.s32.totalorder %s125, %s126
      %p140 = scmp.eq.s32.totalorder %s19, 3
      %p141 = por %p139, %p140
      %p143 = scmp.ne.s32.totalorder %s126, %s142
      %p144 = scmp.eq.s32.totalorder %s19, 0
      %p145 = por %p143, %p144
      %p146 = scmp.le.s32.totalorder 1, %s13
      %p147 = scmp.lt.s32.totalorder %s13, 5
      %p148 = pnand %p146, %p147
      %p149 = pneg %p148
      // Predicated region
      $region9: #{tpu_custom_call.1} parent=5 // pred_check
        _
      $region10: #{tpu_custom_call.1} parent=5 // pred_check_branch
        %151 = sbr.rel (%p148) target = $region12
      $region11: #{tpu_custom_call.1} parent=5 // pred_region
        %s152 = ssub.s32 %s13, 1
        // Predicated region
        $region13: #{tpu_custom_call.1} parent=11 // pred_check
          %p153 = pneg %p86
        $region14: #{tpu_custom_call.1} parent=11 // pred_check_branch
          %155 = sbr.rel (%p153) target = $region16
        $region15: #{tpu_custom_call.1} parent=11 // pred_region
          _
        $region16: #{tpu_custom_call.1} parent=11 // pred_fallthru
          _
      $region12: #{tpu_custom_call.1} parent=5 // pred_fallthru
        _
      %p156 = scmp.lt.s32.totalorder %s13, 4
      // Predicated region
      $region17: #{tpu_custom_call.1} parent=5 // pred_check
        %p157 = pneg %p156
      $region18: #{tpu_custom_call.1} parent=5 // pred_check_branch
        %159 = sbr.rel (%p157) target = $region20
      $region19: #{tpu_custom_call.1} parent=5 // pred_region
        // Predicated region
        $region21: #{tpu_custom_call.1} parent=19 // pred_check
          %p160 = pneg %p33
        $region22: #{tpu_custom_call.1} parent=19 // pred_check_branch
          %162 = sbr.rel (%p160) target = $region24
        $region23: #{tpu_custom_call.1} parent=19 // pred_region
          %p163 = scmp.lt.s32.totalorder %s13, 3
          %s164 = scalar_select %p163, %s13, 3
          %s165 = smul.addr %s164, 8
          %s166 = scalar_lea.vmem %s0, %s165
        $region24: #{tpu_custom_call.1} parent=19 // pred_fallthru
          _
        // Predicated region
        $region25: #{tpu_custom_call.1} parent=19 // pred_check
          %p167 = pneg %p59
        $region26: #{tpu_custom_call.1} parent=19 // pred_check_branch
          %169 = sbr.rel (%p167) target = $region28
        $region27: #{tpu_custom_call.1} parent=19 // pred_region
          %p170 = scmp.lt.s32.totalorder %s13, 3
          %s171 = scalar_select %p170, %s13, 3
          %s172 = smul.addr %s171, 8
          %s173 = scalar_lea.vmem %s1, %s172
        $region28: #{tpu_custom_call.1} parent=19 // pred_fallthru
          _
        // Predicated region
        $region29: #{tpu_custom_call.1} parent=19 // pred_check
          %p174 = pneg %p106
        $region30: #{tpu_custom_call.1} parent=19 // pred_check_branch
          %176 = sbr.rel (%p174) target = $region32
        $region31: #{tpu_custom_call.1} parent=19 // pred_region
          %p177 = scmp.lt.s32.totalorder %s13, 3
          %s178 = scalar_select %p177, %s13, 3
          %s179 = smul.addr %s178, 8
          %s180 = scalar_lea.vmem %s3, %s179
        $region32: #{tpu_custom_call.1} parent=19 // pred_fallthru
          _
      $region20: #{tpu_custom_call.1} parent=5 // pred_fallthru
        _
      %p181 = scmp.le.s32.totalorder 1, %s13
      %p182 = scmp.lt.s32.totalorder %s13, 5
      %p183 = pnand %p181, %p182
      %p184 = pneg %p183
      // Predicated region
      $region33: #{tpu_custom_call.1} parent=5 // pred_check
        _
      $region34: #{tpu_custom_call.1} parent=5 // pred_check_branch
        %186 = sbr.rel (%p183) target = $region36
      $region35: #{tpu_custom_call.1} parent=5 // pred_region
        %s187 = ssub.s32 %s13, 1
        %p188 = scmp.lt.s32.totalorder %s18, 3
        %s189 = scalar_select %p188, %s18, 3
        %s190 = smul.addr %s189, 8
        %s191 = scalar_lea.vmem %s0, %s190
        %p192 = pneg %p39
        %p193 = pneg %p36
        %p194 = scmp.lt.s32.totalorder %s18, 3
        %s195 = scalar_select %p194, %s18, 3
        %s196 = smul.addr %s195, 8
        %s197 = scalar_lea.vmem %s1, %s196
        %p198 = pneg %p65
        %p199 = pneg %p62
        %p200 = pneg %p86
        %p201 = pneg %p83
        %p202 = scmp.lt.s32.totalorder %s18, 3
        %s203 = scalar_select %p202, %s18, 3
        %s204 = smul.addr %s203, 8
        %s205 = scalar_lea.vmem %s3, %s204
        %p206 = pneg %p112
        %p207 = pneg %p109
        %p208 = pneg %p138
        %p209 = pneg %p135
        %s210 = sand.u32 %s125, 1
        %s211 = scalar_lea.sflag [#allocation3], %s210
        %s212 = sand.u32 %s125, 1
        %s213 = smul.addr %s212, 8
        %s214 = scalar_lea.vmem [#allocation2], %s213
        %p215 = scmp.lt.s32.totalorder %s18, 3
        %s216 = scalar_select %p215, %s18, 3
        %s217 = smul.addr %s216, 8
        %s218 = scalar_lea.vmem %s0, %s217
        %p219 = scmp.lt.s32.totalorder %s18, 3
        %s220 = scalar_select %p219, %s18, 3
        %s221 = smul.addr %s220, 8
        %s222 = scalar_lea.vmem %s1, %s221
        %p223 = scmp.lt.s32.totalorder %s18, 3
        %s224 = scalar_select %p223, %s18, 3
        %s225 = smul.addr %s224, 8
        %s226 = scalar_lea.vmem %s3, %s225
        %v227 = vld [vmem:[%s218] sm:$0xff]
        %v228 = vld [vmem:[%s222] sm:$0xff]
        %v229 = vlaneseq
        %v230 = vand.u32 %v229, 127
        %vm231 = vcmp.lt.s32.totalorder %v230, 32
        %v232 = vld [vmem:[%s2] sm:$0xff]
        %v233 = vld [vmem:[%s2 + $0x8] sm:$0xff]
        %v234 = vld [vmem:[%s2 + $0x120] sm:$0x1]
        %v235 = vld [vmem:[%s2 + $0x10] sm:$0xff]
        %v236 = vld [vmem:[%s2 + $0x18] sm:$0xff]
        %v237 = vld [vmem:[%s2 + $0x20] sm:$0xff]
        %v238 = vld [vmem:[%s2 + $0x28] sm:$0xff]
        %v239 = vld [vmem:[%s2 + $0x30] sm:$0xff]
        %v240 = vld [vmem:[%s2 + $0x38] sm:$0xff]
        %v241 = vld [vmem:[%s2 + $0x40] sm:$0xff]
        %v242 = vld [vmem:[%s2 + $0x48] sm:$0xff]
        %v243 = vld [vmem:[%s2 + $0x128] sm:$0x1]
        %v244 = vld [vmem:[%s2 + $0x130] sm:$0x1]
        %v245 = vld [vmem:[%s2 + $0x138] sm:$0x1]
        %v246 = vlaneseq
        %v247 = vshrl.u32 %v246, 7
        %v248 = vsub.s32 0, %v247
        %v249 = vrot.slane %v234, %v248
        %vm250 = vcmask 130048
        %v252 = vsel %vm250, %v227, 0
        %254 = vmatprep.subr.mxu0 0.0
        %255 = vmatpush1.msra.mxu0 %v232
        %256 = vmatprep.subr.mxu0 0.0
        %257 = vmatpush1.msra.mxu0 %v233
        %258 = vmatprep.subr.mxu0 0.0
        %259 = vmatpush1.msra.mxu0 0.0
        %260 = vmatprep.subr.mxu0 0.0
        %261 = vmatpush1.msra.mxu0 0.0
        %262 = vmatprep.subr.mxu0 0.0
        %263 = vmatpush1.msra.mxu0 0.0
        %264 = vmatprep.subr.mxu0 0.0
        %265 = vmatpush1.msra.mxu0 0.0
        %266 = vmatprep.subr.mxu0 0.0
        %267 = vmatpush1.msra.mxu0 0.0
        %268 = vmatprep.subr.mxu0 0.0
        %269 = vmatpush1.msra.mxu0 0.0
        %270 = vmatprep.subr.mxu0 0.0
        %271 = vmatpush1.msra.mxu0 0.0
        %272 = vmatprep.subr.mxu0 0.0
        %273 = vmatpush1.msra.mxu0 0.0
        %274 = vmatprep.subr.mxu0 0.0
        %275 = vmatpush1.msra.mxu0 0.0
        %276 = vmatprep.subr.mxu0 0.0
        %277 = vmatpush1.msra.mxu0 0.0
        %278 = vmatprep.subr.mxu0 0.0
        %279 = vmatpush1.msra.mxu0 0.0
        %280 = vmatprep.subr.mxu0 0.0
        %281 = vmatpush1.msra.mxu0 0.0
        %282 = vmatprep.subr.mxu0 0.0
        %283 = vmatpush1.msra.mxu0 0.0
        %284 = vmatprep.subr.mxu0 0.0
        %285 = vmatpush1.msra.mxu0 0.0
        %286 = vmatprep.subr.mxu0 0.0
        %287 = vmatpush1.msra.mxu0 0.0
        %288 = vmatprep.subr.mxu0 0.0
        %289 = vmatpush1.msra.mxu0 0.0
        %290 = vmatprep.subr.mxu0 0.0
        %291 = vmatpush1.msra.mxu0 0.0
        %292 = vmatprep.subr.mxu0 0.0
        %293 = vmatpush1.msra.mxu0 0.0
        %294 = vmatprep.subr.mxu0 0.0
        %295 = vmatpush1.msra.mxu0 0.0
        %296 = vmatprep.subr.mxu0 0.0
        %297 = vmatpush1.msra.mxu0 0.0
        %298 = vmatprep.subr.mxu0 0.0
        %299 = vmatpush1.msra.mxu0 0.0
        %300 = vmatprep.subr.mxu0 0.0
        %301 = vmatpush1.msra.mxu0 0.0
        %302 = vmatprep.subr.mxu0 0.0
        %303 = vmatpush1.msra.mxu0 0.0
        %304 = vmatprep.subr.mxu0 0.0
        %305 = vmatpush1.msra.mxu0 0.0
        %306 = vmatprep.subr.mxu0 0.0
        %307 = vmatpush1.msra.mxu0 0.0
        %308 = vmatprep.subr.mxu0 0.0
        %309 = vmatpush1.msra.mxu0 0.0
        %310 = vmatprep.subr.mxu0 0.0
        %311 = vmatpush1.msra.mxu0 0.0
        %312 = vmatprep.subr.mxu0 0.0
        %313 = vmatpush1.msra.mxu0 0.0
        %314 = vmatprep.subr.mxu0 0.0
        %315 = vmatpush1.msra.mxu0 0.0
        %316 = vmatprep.subr.mxu0 0.0
        %317 = vmatpush1.msra.mxu0 0.0
        %318 = vmatprep.mubr.f32.mxu0 0.0
        %319 = vmatmul.mubr.f32.gmra.mrb[0].mxu0 %v252
        %v320 = vpop.f32.mrb[0].mxu0
        %v321 = vadd.f32 %v249, %v320
        %v322 = vpop.f32.mrb[0].mxu0
        %323 = vdwg.mxu0
        %vm324 = vcmask 64512
        %v326 = vsel %vm324, %v228, 0
        %328 = vmatprep.subr.mxu0 0.0
        %329 = vmatpush1.msra.mxu0 %v321
        %330 = vmatprep.subr.mxu0 0.0
        %331 = vmatpush1.msra.mxu0 0.0
        %332 = vmatprep.subr.mxu0 0.0
        %333 = vmatpush1.msra.mxu0 0.0
        %334 = vmatprep.subr.mxu0 0.0
        %335 = vmatpush1.msra.mxu0 0.0
        %336 = vmatprep.subr.mxu0 0.0
        %337 = vmatpush1.msra.mxu0 0.0
        %338 = vmatprep.subr.mxu0 0.0
        %339 = vmatpush1.msra.mxu0 0.0
        %340 = vmatprep.subr.mxu0 0.0
        %341 = vmatpush1.msra.mxu0 0.0
        %342 = vmatprep.subr.mxu0 0.0
        %343 = vmatpush1.msra.mxu0 0.0
        %344 = vmatprep.subr.mxu0 0.0
        %345 = vmatpush1.msra.mxu0 0.0
        %346 = vmatprep.subr.mxu0 0.0
        %347 = vmatpush1.msra.mxu0 0.0
        %348 = vmatprep.subr.mxu0 0.0
        %349 = vmatpush1.msra.mxu0 0.0
        %350 = vmatprep.subr.mxu0 0.0
        %351 = vmatpush1.msra.mxu0 0.0
        %352 = vmatprep.subr.mxu0 0.0
        %353 = vmatpush1.msra.mxu0 0.0
        %354 = vmatprep.subr.mxu0 0.0
        %355 = vmatpush1.msra.mxu0 0.0
        %356 = vmatprep.subr.mxu0 0.0
        %357 = vmatpush1.msra.mxu0 0.0
        %358 = vmatprep.subr.mxu0 0.0
        %359 = vmatpush1.msra.mxu0 0.0
        %360 = vmatprep.subr.mxu0 0.0
        %361 = vmatpush1.msra.mxu0 0.0
        %362 = vmatprep.subr.mxu0 0.0
        %363 = vmatpush1.msra.mxu0 0.0
        %364 = vmatprep.subr.mxu0 0.0
        %365 = vmatpush1.msra.mxu0 0.0
        %366 = vmatprep.subr.mxu0 0.0
        %367 = vmatpush1.msra.mxu0 0.0
        %368 = vmatprep.subr.mxu0 0.0
        %369 = vmatpush1.msra.mxu0 0.0
        %370 = vmatprep.subr.mxu0 0.0
        %371 = vmatpush1.msra.mxu0 0.0
        %372 = vmatprep.subr.mxu0 0.0
        %373 = vmatpush1.msra.mxu0 0.0
        %374 = vmatprep.subr.mxu0 0.0
        %375 = vmatpush1.msra.mxu0 0.0
        %376 = vmatprep.subr.mxu0 0.0
        %377 = vmatpush1.msra.mxu0 0.0
        %378 = vmatprep.subr.mxu0 0.0
        %379 = vmatpush1.msra.mxu0 0.0
        %380 = vmatprep.subr.mxu0 0.0
        %381 = vmatpush1.msra.mxu0 0.0
        %382 = vmatprep.subr.mxu0 0.0
        %383 = vmatpush1.msra.mxu0 0.0
        %384 = vmatprep.subr.mxu0 0.0
        %385 = vmatpush1.msra.mxu0 0.0
        %386 = vmatprep.subr.mxu0 0.0
        %387 = vmatpush1.msra.mxu0 0.0
        %388 = vmatprep.subr.mxu0 0.0
        %389 = vmatpush1.msra.mxu0 0.0
        %390 = vmatprep.subr.mxu0 0.0
        %391 = vmatpush1.msra.mxu0 0.0
        %392 = vmatprep.mubr.f32.mxu0 0.0
        %393 = vmatmul.mubr.f32.gmra.mrb[0].mxu0 %v326
        %v394 = vpop.f32.mrb[0].mxu0
        %v395 = vadd.f32 0.0, %v394
        %v396 = vpop.f32.mrb[0].mxu0
        %397 = vdwg.mxu0
        %v398 = vsel %vm231, %v395, %v321
        %v399 = vmax.f32 %v398, 0.0
        %v400 = vlaneseq
        %v401 = vshrl.u32 %v400, 7
        %v402 = vsub.s32 0, %v401
        %v403 = vrot.slane %v243, %v402
        %vm404 = vcmask 523264
        %v406 = vsel %vm404, %v399, 0
        %408 = vmatprep.subr.mxu0 0.0
        %409 = vmatpush1.msra.mxu0 %v235
        %410 = vmatprep.subr.mxu0 0.0
        %411 = vmatpush1.msra.mxu0 %v236
        %412 = vmatprep.subr.mxu0 0.0
        %413 = vmatpush1.msra.mxu0 %v237
        %414 = vmatprep.subr.mxu0 0.0
        %415 = vmatpush1.msra.mxu0 %v238
        %416 = vmatprep.subr.mxu0 0.0
        %417 = vmatpush1.msra.mxu0 %v239
        %418 = vmatprep.subr.mxu0 0.0
        %419 = vmatpush1.msra.mxu0 %v240
        %420 = vmatprep.subr.mxu0 0.0
        %421 = vmatpush1.msra.mxu0 %v241
        %422 = vmatprep.subr.mxu0 0.0
        %423 = vmatpush1.msra.mxu0 %v242
        %424 = vmatprep.subr.mxu0 0.0
        %425 = vmatpush1.msra.mxu0 0.0
        %426 = vmatprep.subr.mxu0 0.0
        %427 = vmatpush1.msra.mxu0 0.0
        %428 = vmatprep.subr.mxu0 0.0
        %429 = vmatpush1.msra.mxu0 0.0
        %430 = vmatprep.subr.mxu0 0.0
        %431 = vmatpush1.msra.mxu0 0.0
        %432 = vmatprep.subr.mxu0 0.0
        %433 = vmatpush1.msra.mxu0 0.0
        %434 = vmatprep.subr.mxu0 0.0
        %435 = vmatpush1.msra.mxu0 0.0
        %436 = vmatprep.subr.mxu0 0.0
        %437 = vmatpush1.msra.mxu0 0.0
        %438 = vmatprep.subr.mxu0 0.0
        %439 = vmatpush1.msra.mxu0 0.0
        %440 = vmatprep.subr.mxu0 0.0
        %441 = vmatpush1.msra.mxu0 0.0
        %442 = vmatprep.subr.mxu0 0.0
        %443 = vmatpush1.msra.mxu0 0.0
        %444 = vmatprep.subr.mxu0 0.0
        %445 = vmatpush1.msra.mxu0 0.0
        %446 = vmatprep.subr.mxu0 0.0
        %447 = vmatpush1.msra.mxu0 0.0
        %448 = vmatprep.subr.mxu0 0.0
        %449 = vmatpush1.msra.mxu0 0.0
        %450 = vmatprep.subr.mxu0 0.0
        %451 = vmatpush1.msra.mxu0 0.0
        %452 = vmatprep.subr.mxu0 0.0
        %453 = vmatpush1.msra.mxu0 0.0
        %454 = vmatprep.subr.mxu0 0.0
        %455 = vmatpush1.msra.mxu0 0.0
        %456 = vmatprep.subr.mxu0 0.0
        %457 = vmatpush1.msra.mxu0 0.0
        %458 = vmatprep.subr.mxu0 0.0
        %459 = vmatpush1.msra.mxu0 0.0
        %460 = vmatprep.subr.mxu0 0.0
        %461 = vmatpush1.msra.mxu0 0.0
        %462 = vmatprep.subr.mxu0 0.0
        %463 = vmatpush1.msra.mxu0 0.0
        %464 = vmatprep.subr.mxu0 0.0
        %465 = vmatpush1.msra.mxu0 0.0
        %466 = vmatprep.subr.mxu0 0.0
        %467 = vmatpush1.msra.mxu0 0.0
        %468 = vmatprep.subr.mxu0 0.0
        %469 = vmatpush1.msra.mxu0 0.0
        %470 = vmatprep.subr.mxu0 0.0
        %471 = vmatpush1.msra.mxu0 0.0
        %472 = vmatprep.mubr.f32.mxu0 0.0
        %473 = vmatmul.mubr.f32.gmra.mrb[0].mxu0 %v406
        %v474 = vpop.f32.mrb[0].mxu0
        %v475 = vadd.f32 %v403, %v474
        %v476 = vpop.f32.mrb[0].mxu0
        %477 = vdwg.mxu0
        %v478 = vmax.f32 %v475, 0.0
        %v479 = vlaneseq
        %v480 = vshrl.u32 %v479, 7
        %v481 = vsub.s32 0, %v480
        %v482 = vrot.slane %v244, %v481
        %v483 = vmul.f32 %v478, %v482
        %vm484 = vcmask 261120
        %v485 = vsel %vm484, %v483, 0.0
        %486 = vadd.xlane.f32.xlu0 %v485
        %v487 = vpop.xlane.xlu0 %486
        %v488 = vlaneseq
        %v489 = vshrl.u32 %v488, 7
        %v490 = vsub.s32 0, %v489
        %v491 = vrot.slane %v245, %v490
        %v492 = vadd.f32 %v487, %v491
        %v493 = vxor.u32 %v492, 2147483648
        %v494 = vmul.f32 %v493, 1.442695
        %v495 = vpow.pop %v494
        %v496 = vadd.f32 %v495, 1.0
        %v497 = vrcp.pop %v496
        %v498 = vmul.f32 1.0, %v497
        %v499 = vld [vmem:[%s2 + $0x50] sm:$0xff]
        %v500 = vld [vmem:[%s2 + $0x58] sm:$0xff]
        %501 = vmatprep.subr.mxu0 0.0
        %502 = vmatpush1.msra.mxu0 %v499
        %503 = vmatprep.subr.mxu0 0.0
        %504 = vmatpush1.msra.mxu0 %v500
        %505 = vmatprep.subr.mxu0 0.0
        %506 = vmatpush1.msra.mxu0 0.0
        %507 = vmatprep.subr.mxu0 0.0
        %508 = vmatpush1.msra.mxu0 0.0
        %509 = vmatprep.subr.mxu0 0.0
        %510 = vmatpush1.msra.mxu0 0.0
        %511 = vmatprep.subr.mxu0 0.0
        %512 = vmatpush1.msra.mxu0 0.0
        %513 = vmatprep.subr.mxu0 0.0
        %514 = vmatpush1.msra.mxu0 0.0
        %515 = vmatprep.subr.mxu0 0.0
        %516 = vmatpush1.msra.mxu0 0.0
        %517 = vmatprep.subr.mxu0 0.0
        %518 = vmatpush1.msra.mxu0 0.0
        %519 = vmatprep.subr.mxu0 0.0
        %520 = vmatpush1.msra.mxu0 0.0
        %521 = vmatprep.subr.mxu0 0.0
        %522 = vmatpush1.msra.mxu0 0.0
        %523 = vmatprep.subr.mxu0 0.0
        %524 = vmatpush1.msra.mxu0 0.0
        %525 = vmatprep.subr.mxu0 0.0
        %526 = vmatpush1.msra.mxu0 0.0
        %527 = vmatprep.subr.mxu0 0.0
        %528 = vmatpush1.msra.mxu0 0.0
        %529 = vmatprep.subr.mxu0 0.0
        %530 = vmatpush1.msra.mxu0 0.0
        %531 = vmatprep.subr.mxu0 0.0
        %532 = vmatpush1.msra.mxu0 0.0
        %533 = vmatprep.subr.mxu0 0.0
        %534 = vmatpush1.msra.mxu0 0.0
        %535 = vmatprep.subr.mxu0 0.0
        %536 = vmatpush1.msra.mxu0 0.0
        %537 = vmatprep.subr.mxu0 0.0
        %538 = vmatpush1.msra.mxu0 0.0
        %539 = vmatprep.subr.mxu0 0.0
        %540 = vmatpush1.msra.mxu0 0.0
        %541 = vmatprep.subr.mxu0 0.0
        %542 = vmatpush1.msra.mxu0 0.0
        %543 = vmatprep.subr.mxu0 0.0
        %544 = vmatpush1.msra.mxu0 0.0
        %545 = vmatprep.subr.mxu0 0.0
        %546 = vmatpush1.msra.mxu0 0.0
        %547 = vmatprep.subr.mxu0 0.0
        %548 = vmatpush1.msra.mxu0 0.0
        %549 = vmatprep.subr.mxu0 0.0
        %550 = vmatpush1.msra.mxu0 0.0
        %551 = vmatprep.subr.mxu0 0.0
        %552 = vmatpush1.msra.mxu0 0.0
        %553 = vmatprep.subr.mxu0 0.0
        %554 = vmatpush1.msra.mxu0 0.0
        %555 = vmatprep.subr.mxu0 0.0
        %556 = vmatpush1.msra.mxu0 0.0
        %557 = vmatprep.subr.mxu0 0.0
        %558 = vmatpush1.msra.mxu0 0.0
        %559 = vmatprep.subr.mxu0 0.0
        %560 = vmatpush1.msra.mxu0 0.0
        %561 = vmatprep.subr.mxu0 0.0
        %562 = vmatpush1.msra.mxu0 0.0
        %563 = vmatprep.subr.mxu0 0.0
        %564 = vmatpush1.msra.mxu0 0.0
        %565 = vmatprep.mubr.f32.mxu0 0.0
        %566 = vmatmul.mubr.f32.gmra.mrb[0].mxu0 %v252
        %v567 = vpop.f32.mrb[0].mxu0
        %v568 = vadd.f32 0.0, %v567
        %v569 = vpop.f32.mrb[0].mxu0
        %570 = vdwg.mxu0
        %572 = vset.pattern.permute.xlu0 0
        %573 = vperm.xlu0 %572, %v498
        %v574 = vpop.permute.xlu0 %573
        %v576 = vmul.f32 %v574, %v568
        %578 = vrot.lane.b32.xlu0 %v568, 96
        %v579 = vpop.permute.xlu0 %578
        %581 = vmatprep.subr.mxu0 0.0
        %582 = vmatpush1.msra.mxu0 %v576
        %583 = vmatprep.subr.mxu0 0.0
        %584 = vmatpush1.msra.mxu0 0.0
        %585 = vmatprep.subr.mxu0 0.0
        %586 = vmatpush1.msra.mxu0 0.0
        %587 = vmatprep.subr.mxu0 0.0
        %588 = vmatpush1.msra.mxu0 0.0
        %589 = vmatprep.subr.mxu0 0.0
        %590 = vmatpush1.msra.mxu0 0.0
        %591 = vmatprep.subr.mxu0 0.0
        %592 = vmatpush1.msra.mxu0 0.0
        %593 = vmatprep.subr.mxu0 0.0
        %594 = vmatpush1.msra.mxu0 0.0
        %595 = vmatprep.subr.mxu0 0.0
        %596 = vmatpush1.msra.mxu0 0.0
        %597 = vmatprep.subr.mxu0 0.0
        %598 = vmatpush1.msra.mxu0 0.0
        %599 = vmatprep.subr.mxu0 0.0
        %600 = vmatpush1.msra.mxu0 0.0
        %601 = vmatprep.subr.mxu0 0.0
        %602 = vmatpush1.msra.mxu0 0.0
        %603 = vmatprep.subr.mxu0 0.0
        %604 = vmatpush1.msra.mxu0 0.0
        %605 = vmatprep.subr.mxu0 0.0
        %606 = vmatpush1.msra.mxu0 0.0
        %607 = vmatprep.subr.mxu0 0.0
        %608 = vmatpush1.msra.mxu0 0.0
        %609 = vmatprep.subr.mxu0 0.0
        %610 = vmatpush1.msra.mxu0 0.0
        %611 = vmatprep.subr.mxu0 0.0
        %612 = vmatpush1.msra.mxu0 0.0
        %613 = vmatprep.subr.mxu0 0.0
        %614 = vmatpush1.msra.mxu0 0.0
        %615 = vmatprep.subr.mxu0 0.0
        %616 = vmatpush1.msra.mxu0 0.0
        %617 = vmatprep.subr.mxu0 0.0
        %618 = vmatpush1.msra.mxu0 0.0
        %619 = vmatprep.subr.mxu0 0.0
        %620 = vmatpush1.msra.mxu0 0.0
        %621 = vmatprep.subr.mxu0 0.0
        %622 = vmatpush1.msra.mxu0 0.0
        %623 = vmatprep.subr.mxu0 0.0
        %624 = vmatpush1.msra.mxu0 0.0
        %625 = vmatprep.subr.mxu0 0.0
        %626 = vmatpush1.msra.mxu0 0.0
        %627 = vmatprep.subr.mxu0 0.0
        %628 = vmatpush1.msra.mxu0 0.0
        %629 = vmatprep.subr.mxu0 0.0
        %630 = vmatpush1.msra.mxu0 0.0
        %631 = vmatprep.subr.mxu0 0.0
        %632 = vmatpush1.msra.mxu0 0.0
        %633 = vmatprep.subr.mxu0 0.0
        %634 = vmatpush1.msra.mxu0 0.0
        %635 = vmatprep.subr.mxu0 0.0
        %636 = vmatpush1.msra.mxu0 0.0
        %637 = vmatprep.subr.mxu0 0.0
        %638 = vmatpush1.msra.mxu0 0.0
        %639 = vmatprep.subr.mxu0 0.0
        %640 = vmatpush1.msra.mxu0 0.0
        %641 = vmatprep.subr.mxu0 0.0
        %642 = vmatpush1.msra.mxu0 0.0
        %643 = vmatprep.subr.mxu0 0.0
        %644 = vmatpush1.msra.mxu0 0.0
        %645 = vmatprep.mubr.f32.mxu0 0.0
        %646 = vmatmul.mubr.f32.gmra.mrb[0].mxu0 %v326
        %v647 = vpop.f32.mrb[0].mxu0
        %v648 = vadd.f32 %v579, %v647
        %v649 = vpop.f32.mrb[0].mxu0
        %650 = vdwg.mxu0
        %v651 = vmul.f32 %v648, %v574
        %v652 = vmax.f32 %v651, 0.0
        %v653 = vmul.f32 %v652, %v574
        %v654 = vld [vmem:[%s2 + $0x60] sm:$0xff]
        %v655 = vld [vmem:[%s2 + $0x68] sm:$0xff]
        %v656 = vld [vmem:[%s2 + $0x70] sm:$0xff]
        %v657 = vld [vmem:[%s2 + $0x78] sm:$0xff]
        %v658 = vld [vmem:[%s2 + $0x140] sm:$0x1]
        %v659 = vld [vmem:[%s2 + $0x80] sm:$0xff]
        %v660 = vld [vmem:[%s2 + $0x88] sm:$0xff]
        %v661 = vld [vmem:[%s2 + $0x90] sm:$0xff]
        %v662 = vld [vmem:[%s2 + $0x98] sm:$0xff]
        %v663 = vld [vmem:[%s2 + $0xa0] sm:$0xff]
        %v664 = vld [vmem:[%s2 + $0xa8] sm:$0xff]
        %v665 = vld [vmem:[%s2 + $0xb0] sm:$0xff]
        %v666 = vld [vmem:[%s2 + $0xb8] sm:$0xff]
        %v667 = vld [vmem:[%s2 + $0x148] sm:$0x1]
        %v668 = vld [vmem:[%s2 + $0x150] sm:$0x1]
        %v669 = vld [vmem:[%s2 + $0x158] sm:$0x1]
        %v670 = vlaneseq
        %v671 = vshrl.u32 %v670, 7
        %v672 = vsub.s32 0, %v671
        %v673 = vrot.slane %v658, %v672
        %v675 = vsel %vm484, %v653, 0
        %677 = vmatprep.subr.mxu0 0.0
        %678 = vmatpush1.msra.mxu0 %v654
        %679 = vmatprep.subr.mxu0 0.0
        %680 = vmatpush1.msra.mxu0 %v655
        %681 = vmatprep.subr.mxu0 0.0
        %682 = vmatpush1.msra.mxu0 %v656
        %683 = vmatprep.subr.mxu0 0.0
        %684 = vmatpush1.msra.mxu0 %v657
        %685 = vmatprep.subr.mxu0 0.0
        %686 = vmatpush1.msra.mxu0 0.0
        %687 = vmatprep.subr.mxu0 0.0
        %688 = vmatpush1.msra.mxu0 0.0
        %689 = vmatprep.subr.mxu0 0.0
        %690 = vmatpush1.msra.mxu0 0.0
        %691 = vmatprep.subr.mxu0 0.0
        %692 = vmatpush1.msra.mxu0 0.0
        %693 = vmatprep.subr.mxu0 0.0
        %694 = vmatpush1.msra.mxu0 0.0
        %695 = vmatprep.subr.mxu0 0.0
        %696 = vmatpush1.msra.mxu0 0.0
        %697 = vmatprep.subr.mxu0 0.0
        %698 = vmatpush1.msra.mxu0 0.0
        %699 = vmatprep.subr.mxu0 0.0
        %700 = vmatpush1.msra.mxu0 0.0
        %701 = vmatprep.subr.mxu0 0.0
        %702 = vmatpush1.msra.mxu0 0.0
        %703 = vmatprep.subr.mxu0 0.0
        %704 = vmatpush1.msra.mxu0 0.0
        %705 = vmatprep.subr.mxu0 0.0
        %706 = vmatpush1.msra.mxu0 0.0
        %707 = vmatprep.subr.mxu0 0.0
        %708 = vmatpush1.msra.mxu0 0.0
        %709 = vmatprep.subr.mxu0 0.0
        %710 = vmatpush1.msra.mxu0 0.0
        %711 = vmatprep.subr.mxu0 0.0
        %712 = vmatpush1.msra.mxu0 0.0
        %713 = vmatprep.subr.mxu0 0.0
        %714 = vmatpush1.msra.mxu0 0.0
        %715 = vmatprep.subr.mxu0 0.0
        %716 = vmatpush1.msra.mxu0 0.0
        %717 = vmatprep.subr.mxu0 0.0
        %718 = vmatpush1.msra.mxu0 0.0
        %719 = vmatprep.subr.mxu0 0.0
        %720 = vmatpush1.msra.mxu0 0.0
        %721 = vmatprep.subr.mxu0 0.0
        %722 = vmatpush1.msra.mxu0 0.0
        %723 = vmatprep.subr.mxu0 0.0
        %724 = vmatpush1.msra.mxu0 0.0
        %725 = vmatprep.subr.mxu0 0.0
        %726 = vmatpush1.msra.mxu0 0.0
        %727 = vmatprep.subr.mxu0 0.0
        %728 = vmatpush1.msra.mxu0 0.0
        %729 = vmatprep.subr.mxu0 0.0
        %730 = vmatpush1.msra.mxu0 0.0
        %731 = vmatprep.subr.mxu0 0.0
        %732 = vmatpush1.msra.mxu0 0.0
        %733 = vmatprep.subr.mxu0 0.0
        %734 = vmatpush1.msra.mxu0 0.0
        %735 = vmatprep.subr.mxu0 0.0
        %736 = vmatpush1.msra.mxu0 0.0
        %737 = vmatprep.subr.mxu0 0.0
        %738 = vmatpush1.msra.mxu0 0.0
        %739 = vmatprep.subr.mxu0 0.0
        %740 = vmatpush1.msra.mxu0 0.0
        %741 = vmatprep.mubr.f32.mxu0 0.0
        %742 = vmatmul.mubr.f32.gmra.mrb[0].mxu0 %v675
        %v743 = vpop.f32.mrb[0].mxu0
        %v744 = vadd.f32 %v673, %v743
        %v745 = vpop.f32.mrb[0].mxu0
        %746 = vdwg.mxu0
        %747 = vmatprep.subr.mxu0 0.0
        %748 = vmatpush1.msra.mxu0 %v744
        %749 = vmatprep.subr.mxu0 0.0
        %750 = vmatpush1.msra.mxu0 0.0
        %751 = vmatprep.subr.mxu0 0.0
        %752 = vmatpush1.msra.mxu0 0.0
        %753 = vmatprep.subr.mxu0 0.0
        %754 = vmatpush1.msra.mxu0 0.0
        %755 = vmatprep.subr.mxu0 0.0
        %756 = vmatpush1.msra.mxu0 0.0
        %757 = vmatprep.subr.mxu0 0.0
        %758 = vmatpush1.msra.mxu0 0.0
        %759 = vmatprep.subr.mxu0 0.0
        %760 = vmatpush1.msra.mxu0 0.0
        %761 = vmatprep.subr.mxu0 0.0
        %762 = vmatpush1.msra.mxu0 0.0
        %763 = vmatprep.subr.mxu0 0.0
        %764 = vmatpush1.msra.mxu0 0.0
        %765 = vmatprep.subr.mxu0 0.0
        %766 = vmatpush1.msra.mxu0 0.0
        %767 = vmatprep.subr.mxu0 0.0
        %768 = vmatpush1.msra.mxu0 0.0
        %769 = vmatprep.subr.mxu0 0.0
        %770 = vmatpush1.msra.mxu0 0.0
        %771 = vmatprep.subr.mxu0 0.0
        %772 = vmatpush1.msra.mxu0 0.0
        %773 = vmatprep.subr.mxu0 0.0
        %774 = vmatpush1.msra.mxu0 0.0
        %775 = vmatprep.subr.mxu0 0.0
        %776 = vmatpush1.msra.mxu0 0.0
        %777 = vmatprep.subr.mxu0 0.0
        %778 = vmatpush1.msra.mxu0 0.0
        %779 = vmatprep.subr.mxu0 0.0
        %780 = vmatpush1.msra.mxu0 0.0
        %781 = vmatprep.subr.mxu0 0.0
        %782 = vmatpush1.msra.mxu0 0.0
        %783 = vmatprep.subr.mxu0 0.0
        %784 = vmatpush1.msra.mxu0 0.0
        %785 = vmatprep.subr.mxu0 0.0
        %786 = vmatpush1.msra.mxu0 0.0
        %787 = vmatprep.subr.mxu0 0.0
        %788 = vmatpush1.msra.mxu0 0.0
        %789 = vmatprep.subr.mxu0 0.0
        %790 = vmatpush1.msra.mxu0 0.0
        %791 = vmatprep.subr.mxu0 0.0
        %792 = vmatpush1.msra.mxu0 0.0
        %793 = vmatprep.subr.mxu0 0.0
        %794 = vmatpush1.msra.mxu0 0.0
        %795 = vmatprep.subr.mxu0 0.0
        %796 = vmatpush1.msra.mxu0 0.0
        %797 = vmatprep.subr.mxu0 0.0
        %798 = vmatpush1.msra.mxu0 0.0
        %799 = vmatprep.subr.mxu0 0.0
        %800 = vmatpush1.msra.mxu0 0.0
        %801 = vmatprep.subr.mxu0 0.0
        %802 = vmatpush1.msra.mxu0 0.0
        %803 = vmatprep.subr.mxu0 0.0
        %804 = vmatpush1.msra.mxu0 0.0
        %805 = vmatprep.subr.mxu0 0.0
        %806 = vmatpush1.msra.mxu0 0.0
        %807 = vmatprep.subr.mxu0 0.0
        %808 = vmatpush1.msra.mxu0 0.0
        %809 = vmatprep.subr.mxu0 0.0
        %810 = vmatpush1.msra.mxu0 0.0
        %811 = vmatprep.mubr.f32.mxu0 0.0
        %812 = vmatmul.mubr.f32.gmra.mrb[0].mxu0 %v326
        %v813 = vpop.f32.mrb[0].mxu0
        %v814 = vadd.f32 0.0, %v813
        %v815 = vpop.f32.mrb[0].mxu0
        %816 = vdwg.mxu0
        %v817 = vsel %vm231, %v814, %v744
        %v818 = vmax.f32 %v817, 0.0
        %v819 = vlaneseq
        %v820 = vshrl.u32 %v819, 7
        %v821 = vsub.s32 0, %v820
        %v822 = vrot.slane %v667, %v821
        %v824 = vsel %vm404, %v818, 0
        %826 = vmatprep.subr.mxu0 0.0
        %827 = vmatpush1.msra.mxu0 %v659
        %828 = vmatprep.subr.mxu0 0.0
        %829 = vmatpush1.msra.mxu0 %v660
        %830 = vmatprep.subr.mxu0 0.0
        %831 = vmatpush1.msra.mxu0 %v661
        %832 = vmatprep.subr.mxu0 0.0
        %833 = vmatpush1.msra.mxu0 %v662
        %834 = vmatprep.subr.mxu0 0.0
        %835 = vmatpush1.msra.mxu0 %v663
        %836 = vmatprep.subr.mxu0 0.0
        %837 = vmatpush1.msra.mxu0 %v664
        %838 = vmatprep.subr.mxu0 0.0
        %839 = vmatpush1.msra.mxu0 %v665
        %840 = vmatprep.subr.mxu0 0.0
        %841 = vmatpush1.msra.mxu0 %v666
        %842 = vmatprep.subr.mxu0 0.0
        %843 = vmatpush1.msra.mxu0 0.0
        %844 = vmatprep.subr.mxu0 0.0
        %845 = vmatpush1.msra.mxu0 0.0
        %846 = vmatprep.subr.mxu0 0.0
        %847 = vmatpush1.msra.mxu0 0.0
        %848 = vmatprep.subr.mxu0 0.0
        %849 = vmatpush1.msra.mxu0 0.0
        %850 = vmatprep.subr.mxu0 0.0
        %851 = vmatpush1.msra.mxu0 0.0
        %852 = vmatprep.subr.mxu0 0.0
        %853 = vmatpush1.msra.mxu0 0.0
        %854 = vmatprep.subr.mxu0 0.0
        %855 = vmatpush1.msra.mxu0 0.0
        %856 = vmatprep.subr.mxu0 0.0
        %857 = vmatpush1.msra.mxu0 0.0
        %858 = vmatprep.subr.mxu0 0.0
        %859 = vmatpush1.msra.mxu0 0.0
        %860 = vmatprep.subr.mxu0 0.0
        %861 = vmatpush1.msra.mxu0 0.0
        %862 = vmatprep.subr.mxu0 0.0
        %863 = vmatpush1.msra.mxu0 0.0
        %864 = vmatprep.subr.mxu0 0.0
        %865 = vmatpush1.msra.mxu0 0.0
        %866 = vmatprep.subr.mxu0 0.0
        %867 = vmatpush1.msra.mxu0 0.0
        %868 = vmatprep.subr.mxu0 0.0
        %869 = vmatpush1.msra.mxu0 0.0
        %870 = vmatprep.subr.mxu0 0.0
        %871 = vmatpush1.msra.mxu0 0.0
        %872 = vmatprep.subr.mxu0 0.0
        %873 = vmatpush1.msra.mxu0 0.0
        %874 = vmatprep.subr.mxu0 0.0
        %875 = vmatpush1.msra.mxu0 0.0
        %876 = vmatprep.subr.mxu0 0.0
        %877 = vmatpush1.msra.mxu0 0.0
        %878 = vmatprep.subr.mxu0 0.0
        %879 = vmatpush1.msra.mxu0 0.0
        %880 = vmatprep.subr.mxu0 0.0
        %881 = vmatpush1.msra.mxu0 0.0
        %882 = vmatprep.subr.mxu0 0.0
        %883 = vmatpush1.msra.mxu0 0.0
        %884 = vmatprep.subr.mxu0 0.0
        %885 = vmatpush1.msra.mxu0 0.0
        %886 = vmatprep.subr.mxu0 0.0
        %887 = vmatpush1.msra.mxu0 0.0
        %888 = vmatprep.subr.mxu0 0.0
        %889 = vmatpush1.msra.mxu0 0.0
        %890 = vmatprep.mubr.f32.mxu0 0.0
        %891 = vmatmul.mubr.f32.gmra.mrb[0].mxu0 %v824
        %v892 = vpop.f32.mrb[0].mxu0
        %v893 = vadd.f32 %v822, %v892
        %v894 = vpop.f32.mrb[0].mxu0
        %895 = vdwg.mxu0
        %v896 = vmax.f32 %v893, 0.0
        %v897 = vlaneseq
        %v898 = vshrl.u32 %v897, 7
        %v899 = vsub.s32 0, %v898
        %v900 = vrot.slane %v668, %v899
        %v901 = vmul.f32 %v896, %v900
        %v902 = vsel %vm484, %v901, 0.0
        %903 = vadd.xlane.f32.xlu0 %v902
        %v904 = vpop.xlane.xlu0 %903
        %v905 = vlaneseq
        %v906 = vshrl.u32 %v905, 7
        %v907 = vsub.s32 0, %v906
        %v908 = vrot.slane %v669, %v907
        %v909 = vadd.f32 %v904, %v908
        %v910 = vxor.u32 %v909, 2147483648
        %v911 = vmul.f32 %v910, 1.442695
        %v912 = vpow.pop %v911
        %v913 = vadd.f32 %v912, 1.0
        %v914 = vrcp.pop %v913
        %v915 = vmul.f32 1.0, %v914
        %v916 = vld [vmem:[%s2 + $0xc0] sm:$0xff]
        %v917 = vld [vmem:[%s2 + $0xc8] sm:$0xff]
        %v918 = vld [vmem:[%s2 + $0xd0] sm:$0xff]
        %v919 = vld [vmem:[%s2 + $0xd8] sm:$0xff]
        %v921 = vsel %vm484, %v652, 0
        %923 = vmatprep.subr.mxu0 0.0
        %924 = vmatpush1.msra.mxu0 %v916
        %925 = vmatprep.subr.mxu0 0.0
        %926 = vmatpush1.msra.mxu0 %v917
        %927 = vmatprep.subr.mxu0 0.0
        %928 = vmatpush1.msra.mxu0 %v918
        %929 = vmatprep.subr.mxu0 0.0
        %930 = vmatpush1.msra.mxu0 %v919
        %931 = vmatprep.subr.mxu0 0.0
        %932 = vmatpush1.msra.mxu0 0.0
        %933 = vmatprep.subr.mxu0 0.0
        %934 = vmatpush1.msra.mxu0 0.0
        %935 = vmatprep.subr.mxu0 0.0
        %936 = vmatpush1.msra.mxu0 0.0
        %937 = vmatprep.subr.mxu0 0.0
        %938 = vmatpush1.msra.mxu0 0.0
        %939 = vmatprep.subr.mxu0 0.0
        %940 = vmatpush1.msra.mxu0 0.0
        %941 = vmatprep.subr.mxu0 0.0
        %942 = vmatpush1.msra.mxu0 0.0
        %943 = vmatprep.subr.mxu0 0.0
        %944 = vmatpush1.msra.mxu0 0.0
        %945 = vmatprep.subr.mxu0 0.0
        %946 = vmatpush1.msra.mxu0 0.0
        %947 = vmatprep.subr.mxu0 0.0
        %948 = vmatpush1.msra.mxu0 0.0
        %949 = vmatprep.subr.mxu0 0.0
        %950 = vmatpush1.msra.mxu0 0.0
        %951 = vmatprep.subr.mxu0 0.0
        %952 = vmatpush1.msra.mxu0 0.0
        %953 = vmatprep.subr.mxu0 0.0
        %954 = vmatpush1.msra.mxu0 0.0
        %955 = vmatprep.subr.mxu0 0.0
        %956 = vmatpush1.msra.mxu0 0.0
        %957 = vmatprep.subr.mxu0 0.0
        %958 = vmatpush1.msra.mxu0 0.0
        %959 = vmatprep.subr.mxu0 0.0
        %960 = vmatpush1.msra.mxu0 0.0
        %961 = vmatprep.subr.mxu0 0.0
        %962 = vmatpush1.msra.mxu0 0.0
        %963 = vmatprep.subr.mxu0 0.0
        %964 = vmatpush1.msra.mxu0 0.0
        %965 = vmatprep.subr.mxu0 0.0
        %966 = vmatpush1.msra.mxu0 0.0
        %967 = vmatprep.subr.mxu0 0.0
        %968 = vmatpush1.msra.mxu0 0.0
        %969 = vmatprep.subr.mxu0 0.0
        %970 = vmatpush1.msra.mxu0 0.0
        %971 = vmatprep.subr.mxu0 0.0
        %972 = vmatpush1.msra.mxu0 0.0
        %973 = vmatprep.subr.mxu0 0.0
        %974 = vmatpush1.msra.mxu0 0.0
        %975 = vmatprep.subr.mxu0 0.0
        %976 = vmatpush1.msra.mxu0 0.0
        %977 = vmatprep.subr.mxu0 0.0
        %978 = vmatpush1.msra.mxu0 0.0
        %979 = vmatprep.subr.mxu0 0.0
        %980 = vmatpush1.msra.mxu0 0.0
        %981 = vmatprep.subr.mxu0 0.0
        %982 = vmatpush1.msra.mxu0 0.0
        %983 = vmatprep.subr.mxu0 0.0
        %984 = vmatpush1.msra.mxu0 0.0
        %985 = vmatprep.subr.mxu0 0.0
        %986 = vmatpush1.msra.mxu0 0.0
        %987 = vmatprep.mubr.f32.mxu0 0.0
        %988 = vmatmul.mubr.f32.gmra.mrb[0].mxu0 %v921
        %v989 = vpop.f32.mrb[0].mxu0
        %v990 = vadd.f32 0.0, %v989
        %v991 = vpop.f32.mrb[0].mxu0
        %992 = vdwg.mxu0
        %994 = vset.pattern.permute.xlu0 0
        %995 = vperm.xlu0 %994, %v915
        %v996 = vpop.permute.xlu0 %995
        %v998 = vmul.f32 %v996, %v990
        %1000 = vrot.lane.b32.xlu0 %v990, 96
        %v1001 = vpop.permute.xlu0 %1000
        %1003 = vmatprep.subr.mxu0 0.0
        %1004 = vmatpush1.msra.mxu0 %v998
        %1005 = vmatprep.subr.mxu0 0.0
        %1006 = vmatpush1.msra.mxu0 0.0
        %1007 = vmatprep.subr.mxu0 0.0
        %1008 = vmatpush1.msra.mxu0 0.0
        %1009 = vmatprep.subr.mxu0 0.0
        %1010 = vmatpush1.msra.mxu0 0.0
        %1011 = vmatprep.subr.mxu0 0.0
        %1012 = vmatpush1.msra.mxu0 0.0
        %1013 = vmatprep.subr.mxu0 0.0
        %1014 = vmatpush1.msra.mxu0 0.0
        %1015 = vmatprep.subr.mxu0 0.0
        %1016 = vmatpush1.msra.mxu0 0.0
        %1017 = vmatprep.subr.mxu0 0.0
        %1018 = vmatpush1.msra.mxu0 0.0
        %1019 = vmatprep.subr.mxu0 0.0
        %1020 = vmatpush1.msra.mxu0 0.0
        %1021 = vmatprep.subr.mxu0 0.0
        %1022 = vmatpush1.msra.mxu0 0.0
        %1023 = vmatprep.subr.mxu0 0.0
        %1024 = vmatpush1.msra.mxu0 0.0
        %1025 = vmatprep.subr.mxu0 0.0
        %1026 = vmatpush1.msra.mxu0 0.0
        %1027 = vmatprep.subr.mxu0 0.0
        %1028 = vmatpush1.msra.mxu0 0.0
        %1029 = vmatprep.subr.mxu0 0.0
        %1030 = vmatpush1.msra.mxu0 0.0
        %1031 = vmatprep.subr.mxu0 0.0
        %1032 = vmatpush1.msra.mxu0 0.0
        %1033 = vmatprep.subr.mxu0 0.0
        %1034 = vmatpush1.msra.mxu0 0.0
        %1035 = vmatprep.subr.mxu0 0.0
        %1036 = vmatpush1.msra.mxu0 0.0
        %1037 = vmatprep.subr.mxu0 0.0
        %1038 = vmatpush1.msra.mxu0 0.0
        %1039 = vmatprep.subr.mxu0 0.0
        %1040 = vmatpush1.msra.mxu0 0.0
        %1041 = vmatprep.subr.mxu0 0.0
        %1042 = vmatpush1.msra.mxu0 0.0
        %1043 = vmatprep.subr.mxu0 0.0
        %1044 = vmatpush1.msra.mxu0 0.0
        %1045 = vmatprep.subr.mxu0 0.0
        %1046 = vmatpush1.msra.mxu0 0.0
        %1047 = vmatprep.subr.mxu0 0.0
        %1048 = vmatpush1.msra.mxu0 0.0
        %1049 = vmatprep.subr.mxu0 0.0
        %1050 = vmatpush1.msra.mxu0 0.0
        %1051 = vmatprep.subr.mxu0 0.0
        %1052 = vmatpush1.msra.mxu0 0.0
        %1053 = vmatprep.subr.mxu0 0.0
        %1054 = vmatpush1.msra.mxu0 0.0
        %1055 = vmatprep.subr.mxu0 0.0
        %1056 = vmatpush1.msra.mxu0 0.0
        %1057 = vmatprep.subr.mxu0 0.0
        %1058 = vmatpush1.msra.mxu0 0.0
        %1059 = vmatprep.subr.mxu0 0.0
        %1060 = vmatpush1.msra.mxu0 0.0
        %1061 = vmatprep.subr.mxu0 0.0
        %1062 = vmatpush1.msra.mxu0 0.0
        %1063 = vmatprep.subr.mxu0 0.0
        %1064 = vmatpush1.msra.mxu0 0.0
        %1065 = vmatprep.subr.mxu0 0.0
        %1066 = vmatpush1.msra.mxu0 0.0
        %1067 = vmatprep.mubr.f32.mxu0 0.0
        %1068 = vmatmul.mubr.f32.gmra.mrb[0].mxu0 %v326
        %v1069 = vpop.f32.mrb[0].mxu0
        %v1070 = vadd.f32 %v1001, %v1069
        %v1071 = vpop.f32.mrb[0].mxu0
        %1072 = vdwg.mxu0
        %v1073 = vmul.f32 %v1070, %v996
        %v1074 = vmax.f32 %v1073, 0.0
        %v1075 = vld [vmem:[%s2 + $0xe0] sm:$0xff]
        %v1076 = vld [vmem:[%s2 + $0xe8] sm:$0xff]
        %v1077 = vld [vmem:[%s2 + $0xf0] sm:$0xff]
        %v1078 = vld [vmem:[%s2 + $0xf8] sm:$0xff]
        %v1079 = vld [vmem:[%s2 + $0x160] sm:$0x1]
        %v1080 = vlaneseq
        %v1081 = vshrl.u32 %v1080, 7
        %v1082 = vsub.s32 0, %v1081
        %v1083 = vrot.slane %v1079, %v1082
        %v1085 = vsel %vm484, %v1074, 0
        %1087 = vmatprep.subr.mxu0 0.0
        %1088 = vmatpush1.msra.mxu0 %v1075
        %1089 = vmatprep.subr.mxu0 0.0
        %1090 = vmatpush1.msra.mxu0 %v1076
        %1091 = vmatprep.subr.mxu0 0.0
        %1092 = vmatpush1.msra.mxu0 %v1077
        %1093 = vmatprep.subr.mxu0 0.0
        %1094 = vmatpush1.msra.mxu0 %v1078
        %1095 = vmatprep.subr.mxu0 0.0
        %1096 = vmatpush1.msra.mxu0 0.0
        %1097 = vmatprep.subr.mxu0 0.0
        %1098 = vmatpush1.msra.mxu0 0.0
        %1099 = vmatprep.subr.mxu0 0.0
        %1100 = vmatpush1.msra.mxu0 0.0
        %1101 = vmatprep.subr.mxu0 0.0
        %1102 = vmatpush1.msra.mxu0 0.0
        %1103 = vmatprep.subr.mxu0 0.0
        %1104 = vmatpush1.msra.mxu0 0.0
        %1105 = vmatprep.subr.mxu0 0.0
        %1106 = vmatpush1.msra.mxu0 0.0
        %1107 = vmatprep.subr.mxu0 0.0
        %1108 = vmatpush1.msra.mxu0 0.0
        %1109 = vmatprep.subr.mxu0 0.0
        %1110 = vmatpush1.msra.mxu0 0.0
        %1111 = vmatprep.subr.mxu0 0.0
        %1112 = vmatpush1.msra.mxu0 0.0
        %1113 = vmatprep.subr.mxu0 0.0
        %1114 = vmatpush1.msra.mxu0 0.0
        %1115 = vmatprep.subr.mxu0 0.0
        %1116 = vmatpush1.msra.mxu0 0.0
        %1117 = vmatprep.subr.mxu0 0.0
        %1118 = vmatpush1.msra.mxu0 0.0
        %1119 = vmatprep.subr.mxu0 0.0
        %1120 = vmatpush1.msra.mxu0 0.0
        %1121 = vmatprep.subr.mxu0 0.0
        %1122 = vmatpush1.msra.mxu0 0.0
        %1123 = vmatprep.subr.mxu0 0.0
        %1124 = vmatpush1.msra.mxu0 0.0
        %1125 = vmatprep.subr.mxu0 0.0
        %1126 = vmatpush1.msra.mxu0 0.0
        %1127 = vmatprep.subr.mxu0 0.0
        %1128 = vmatpush1.msra.mxu0 0.0
        %1129 = vmatprep.subr.mxu0 0.0
        %1130 = vmatpush1.msra.mxu0 0.0
        %1131 = vmatprep.subr.mxu0 0.0
        %1132 = vmatpush1.msra.mxu0 0.0
        %1133 = vmatprep.subr.mxu0 0.0
        %1134 = vmatpush1.msra.mxu0 0.0
        %1135 = vmatprep.subr.mxu0 0.0
        %1136 = vmatpush1.msra.mxu0 0.0
        %1137 = vmatprep.subr.mxu0 0.0
        %1138 = vmatpush1.msra.mxu0 0.0
        %1139 = vmatprep.subr.mxu0 0.0
        %1140 = vmatpush1.msra.mxu0 0.0
        %1141 = vmatprep.subr.mxu0 0.0
        %1142 = vmatpush1.msra.mxu0 0.0
        %1143 = vmatprep.subr.mxu0 0.0
        %1144 = vmatpush1.msra.mxu0 0.0
        %1145 = vmatprep.subr.mxu0 0.0
        %1146 = vmatpush1.msra.mxu0 0.0
        %1147 = vmatprep.subr.mxu0 0.0
        %1148 = vmatpush1.msra.mxu0 0.0
        %1149 = vmatprep.subr.mxu0 0.0
        %1150 = vmatpush1.msra.mxu0 0.0
        %1151 = vmatprep.mubr.f32.mxu0 0.0
        %1152 = vmatmul.mubr.f32.gmra.mrb[0].mxu0 %v1085
        %v1153 = vpop.f32.mrb[0].mxu0
        %v1154 = vadd.f32 %v1083, %v1153
        %v1155 = vpop.f32.mrb[0].mxu0
        %1156 = vdwg.mxu0
        %v1157 = vmax.f32 %v1154, 0.0
        %v1158 = vld [vmem:[%s226] sm:$0xff]
        %v1159 = vmul.f32 %v1157, %v1158
        %v1160 = vld [vmem:[%s2 + $0x100] sm:$0xff]
        %v1161 = vld [vmem:[%s2 + $0x108] sm:$0xff]
        %v1162 = vld [vmem:[%s2 + $0x110] sm:$0xff]
        %v1163 = vld [vmem:[%s2 + $0x118] sm:$0xff]
        %v1164 = vld [vmem:[%s2 + $0x168] sm:$0x1]
        %v1165 = vlaneseq
        %v1166 = vshrl.u32 %v1165, 7
        %v1167 = vsub.s32 0, %v1166
        %v1168 = vrot.slane %v1164, %v1167
        %v1170 = vsel %vm484, %v1159, 0
        %1172 = vmatprep.subr.mxu0 0.0
        %1173 = vmatpush1.msra.mxu0 %v1160
        %1174 = vmatprep.subr.mxu0 0.0
        %1175 = vmatpush1.msra.mxu0 %v1161
        %1176 = vmatprep.subr.mxu0 0.0
        %1177 = vmatpush1.msra.mxu0 %v1162
        %1178 = vmatprep.subr.mxu0 0.0
        %1179 = vmatpush1.msra.mxu0 %v1163
        %1180 = vmatprep.subr.mxu0 0.0
        %1181 = vmatpush1.msra.mxu0 0.0
        %1182 = vmatprep.subr.mxu0 0.0
        %1183 = vmatpush1.msra.mxu0 0.0
        %1184 = vmatprep.subr.mxu0 0.0
        %1185 = vmatpush1.msra.mxu0 0.0
        %1186 = vmatprep.subr.mxu0 0.0
        %1187 = vmatpush1.msra.mxu0 0.0
        %1188 = vmatprep.subr.mxu0 0.0
        %1189 = vmatpush1.msra.mxu0 0.0
        %1190 = vmatprep.subr.mxu0 0.0
        %1191 = vmatpush1.msra.mxu0 0.0
        %1192 = vmatprep.subr.mxu0 0.0
        %1193 = vmatpush1.msra.mxu0 0.0
        %1194 = vmatprep.subr.mxu0 0.0
        %1195 = vmatpush1.msra.mxu0 0.0
        %1196 = vmatprep.subr.mxu0 0.0
        %1197 = vmatpush1.msra.mxu0 0.0
        %1198 = vmatprep.subr.mxu0 0.0
        %1199 = vmatpush1.msra.mxu0 0.0
        %1200 = vmatprep.subr.mxu0 0.0
        %1201 = vmatpush1.msra.mxu0 0.0
        %1202 = vmatprep.subr.mxu0 0.0
        %1203 = vmatpush1.msra.mxu0 0.0
        %1204 = vmatprep.subr.mxu0 0.0
        %1205 = vmatpush1.msra.mxu0 0.0
        %1206 = vmatprep.subr.mxu0 0.0
        %1207 = vmatpush1.msra.mxu0 0.0
        %1208 = vmatprep.subr.mxu0 0.0
        %1209 = vmatpush1.msra.mxu0 0.0
        %1210 = vmatprep.subr.mxu0 0.0
        %1211 = vmatpush1.msra.mxu0 0.0
        %1212 = vmatprep.subr.mxu0 0.0
        %1213 = vmatpush1.msra.mxu0 0.0
        %1214 = vmatprep.subr.mxu0 0.0
        %1215 = vmatpush1.msra.mxu0 0.0
        %1216 = vmatprep.subr.mxu0 0.0
        %1217 = vmatpush1.msra.mxu0 0.0
        %1218 = vmatprep.subr.mxu0 0.0
        %1219 = vmatpush1.msra.mxu0 0.0
        %1220 = vmatprep.subr.mxu0 0.0
        %1221 = vmatpush1.msra.mxu0 0.0
        %1222 = vmatprep.subr.mxu0 0.0
        %1223 = vmatpush1.msra.mxu0 0.0
        %1224 = vmatprep.subr.mxu0 0.0
        %1225 = vmatpush1.msra.mxu0 0.0
        %1226 = vmatprep.subr.mxu0 0.0
        %1227 = vmatpush1.msra.mxu0 0.0
        %1228 = vmatprep.subr.mxu0 0.0
        %1229 = vmatpush1.msra.mxu0 0.0
        %1230 = vmatprep.subr.mxu0 0.0
        %1231 = vmatpush1.msra.mxu0 0.0
        %1232 = vmatprep.subr.mxu0 0.0
        %1233 = vmatpush1.msra.mxu0 0.0
        %1234 = vmatprep.subr.mxu0 0.0
        %1235 = vmatpush1.msra.mxu0 0.0
        %1236 = vmatprep.mubr.f32.mxu0 0.0
        %1237 = vmatmul.mubr.f32.gmra.mrb[0].mxu0 %v1170
        %v1238 = vpop.f32.mrb[0].mxu0
        %v1239 = vadd.f32 %v1168, %v1238
        %v1240 = vpop.f32.mrb[0].mxu0
        %1241 = vdwg.mxu0
        %1242 = vst.msk [vmem:[%s214] sm:$0xff] %vm484, %v1239
        %s1243 = sand.u32 %s125, 1
        %s1244 = scalar_lea.sflag [#allocation3], %s1243
        %s1245 = sand.u32 %s125, 1
        %s1246 = smul.addr %s1245, 8
        %s1247 = scalar_lea.vmem [#allocation2], %s1246
        // Predicated region
        $region37: #{tpu_custom_call.1} parent=35 // pred_check
          %p1248 = pneg %p135
        $region38: #{tpu_custom_call.1} parent=35 // pred_check_branch
          %1250 = sbr.rel (%p1248) target = $region40
        $region39: #{tpu_custom_call.1} parent=35 // pred_region
          %s1252 = ssub.s32 128, 128
          %1253 = vsyncadd %s1244, %s1252
          %s1254 = smul.addr %s18, 128
          %s1255 = scalar_lea.hbm %s4, %s1254
          %s1257 = sshll.u32 %s1247, 4
          %s1258 = int_to_ptr.vmem [resolvable:$true] %s1257
          %1260 = dma.vmem_to_hbm [thread:$0]  %s1258, 128, %s1255, %s1244
        $region40: #{tpu_custom_call.1} parent=35 // pred_fallthru
          _
      $region36: #{tpu_custom_call.1} parent=5 // pred_fallthru
        _
      %p1261 = scmp.le.s32.totalorder 2, %s13
      // Predicated region
      $region41: #{tpu_custom_call.1} parent=5 // pred_check
        %p1262 = pneg %p1261
      $region42: #{tpu_custom_call.1} parent=5 // pred_check_branch
        %1264 = sbr.rel (%p1262) target = $region44
      $region43: #{tpu_custom_call.1} parent=5 // pred_region
        %s1265 = ssub.s32 %s13, 2
        // Predicated region
        $region45: #{tpu_custom_call.1} parent=43 // pred_check
          %p1266 = pneg %p141
        $region46: #{tpu_custom_call.1} parent=43 // pred_check_branch
          %1268 = sbr.rel (%p1266) target = $region48
        $region47: #{tpu_custom_call.1} parent=43 // pred_region
          %s1269 = sand.u32 %s126, 1
          %s1270 = scalar_lea.sflag [#allocation3], %s1269
          %s1271 = sand.u32 %s126, 1
          %s1272 = smul.addr %s1271, 8
          %s1273 = scalar_lea.vmem [#allocation2], %s1272
          %1274 = dma.done %s1270, 128
        $region48: #{tpu_custom_call.1} parent=43 // pred_fallthru
          _
      $region44: #{tpu_custom_call.1} parent=5 // pred_fallthru
        _
    $region6: #{tpu_custom_call.1} parent=1 // loop_footer
      %s17 = sadd.s32 1, %s13
    $region7: #{tpu_custom_call.1} parent=1 // loop_footer_branch
      %12 = sbr.rel target = $region3
    $region8: #{tpu_custom_call.1} parent=1 // loop_exit
      _
    %1275 = vsyncpa [#allocation3], 1
    %s1276 = scalar_lea.sflag [#allocation3], 1
    %1277 = vsyncpa %s1276, 1

</llo_original>
